<compile_context>
chip_gen: v6e
topology: v6e:2x2x1
jax: 0.10.0
libtpu: 0.0.40
codegen_flags: <defaults>
</compile_context>

<pallas_src>
import functools
import numpy as np

import jax
import jax.numpy as jnp
from jax.experimental import pallas as pl
from jax.experimental.pallas import tpu as pltpu


def _round_up(x, m):
    return ((x + m - 1) // m) * m


def _cond_conv_kernel(routing_ref, w_ref, x_ref, o_ref, *,
                      num_experts, offsets, out_len):
    """One grid step == one batch sample.

    routing_ref: (B*E,)                f32 in SMEM (flattened routing weights)
    w_ref      : (E, kh*kw, Cout, Cin) f32 in VMEM (per-tap expert filters)
    x_ref      : (1, Cin, Lpad)        f32 in VMEM (padded, flattened sample)
    o_ref      : (1, Cout, Lout)       f32 in VMEM (flattened padded-grid out)
    """
    b = pl.program_id(0)

    # Per-sample expert mixing (routing @ expert_weights), once per sample.
    mixed = routing_ref[b * num_experts] * w_ref[0]
    for e in range(1, num_experts):
        mixed = mixed + routing_ref[b * num_experts + e] * w_ref[e]

    # Convolution as kh*kw shifted matmuls; lanes carry the spatial dim
    # (multiple of 128) so both the MXU output tile and the stores are dense.
    acc = jnp.dot(mixed[0], x_ref[0, :, pl.ds(offsets[0], out_len)],
                  preferred_element_type=jnp.float32)
    for t in range(1, len(offsets)):
        slab = x_ref[0, :, pl.ds(offsets[t], out_len)]        # (Cin, Lout)
        acc = acc + jnp.dot(mixed[t], slab,
                            preferred_element_type=jnp.float32)
    o_ref[0] = acc.astype(o_ref.dtype)


def cond_conv2d_forward(x, routing, expert_weight, *, out_channels,
                        kernel_size=(3, 3), stride=(1, 1), dilation=(1, 1),
                        num_experts=4):
    """CondConv2d.forward (groups=1, bias=False, static 'same' padding)."""
    # TODO(synk): stride>1 (timm dynamic 'same' padding), groups>1 and the
    # per-sample bias path of the PyTorch module are not implemented here.
    B, C, H, W = x.shape
    kh, kw = kernel_size
    sh, sw = stride
    dh, dw = dilation
    assert sh == 1 and sw == 1, "only stride=1 is supported by this kernel"

    # timm get_padding_value(padding='', ...) -> static symmetric padding.
    ph = ((sh - 1) + dh * (kh - 1)) // 2
    pw = ((sw - 1) + dw * (kw - 1)) // 2
    Hp, Wp = H + 2 * ph, W + 2 * pw
    H_out = Hp - dh * (kh - 1)
    W_out = Wp - dw * (kw - 1)

    HpWp = Hp * Wp
    Lout = _round_up(HpWp, 128)                       # lane-dense output width
    max_off = (kh - 1) * dh * Wp + (kw - 1) * dw      # largest tap shift
    # Extra zero rows at the bottom so every shifted window of length Lout is
    # in-bounds; fused into the same jnp.pad as the spatial "same" padding.
    need = max_off + Lout
    rows_extra = -(-max(0, need - HpWp) // Wp)        # ceil div
    Lpad = (Hp + rows_extra) * Wp

    # ---- glue: single zero-pad + flatten spatial dims (pure data movement) --
    x_pad = jnp.pad(x, ((0, 0), (0, 0), (ph, ph + rows_extra), (pw, pw)))
    x_flat = x_pad.reshape(B, C, Lpad)

    # expert_weight rows are flattened (Cout, Cin, kh, kw) like PyTorch.
    w5 = expert_weight.reshape(num_experts, out_channels, C, kh, kw)
    # -> (E, kh, kw, Cout, Cin) -> (E, kh*kw, Cout, Cin): per-tap filter mats.
    w_k = jnp.transpose(w5, (0, 3, 4, 1, 2)).reshape(
        num_experts, kh * kw, out_channels, C)

    # Shift of the flattened padded grid for each kernel tap (i, j).
    offsets = tuple(i * dh * Wp + j * dw for i in range(kh) for j in range(kw))

    kernel = functools.partial(_cond_conv_kernel, num_experts=num_experts,
                               offsets=offsets, out_len=Lout)
    out = pl.pallas_call(
        kernel,
        out_shape=jax.ShapeDtypeStruct((B, out_channels, Lout), x.dtype),
        grid=(B,),
        in_specs=[
            pl.BlockSpec(memory_space=pltpu.MemorySpace.SMEM),   # routing (B*E,)
            pl.BlockSpec((num_experts, kh * kw, out_channels, C),
                         lambda b: (0, 0, 0, 0)),
            pl.BlockSpec((1, C, Lpad), lambda b: (b, 0, 0)),
        ],
        out_specs=pl.BlockSpec((1, out_channels, Lout), lambda b: (b, 0, 0)),
        compiler_params=pltpu.CompilerParams(
            dimension_semantics=("parallel",),        # disjoint outputs per b
            vmem_limit_bytes=32 * 1024 * 1024),
    )(routing.reshape(-1), w_k, x_flat)

    # Valid output pixel (y, x) sits at flattened position p = y*Wp + x.
    out = out[:, :, :HpWp].reshape(B, out_channels, Hp, Wp)
    out = out[:, :, :H_out, :W_out]                   # already NCHW
    return out


def _reference(x, routing, expert_weight, *, out_channels, kernel_size,
               stride, dilation, num_experts):
    """Pure-JAX reference: per-sample conv with mixed expert weights."""
    B, C, H, W = x.shape
    kh, kw = kernel_size
    sh, sw = stride
    dh, dw = dilation
    ph = ((sh - 1) + dh * (kh - 1)) // 2
    pw = ((sw - 1) + dw * (kw - 1)) // 2
    w5 = expert_weight.reshape(num_experts, out_channels, C, kh, kw)
    mixed = jnp.einsum('be,eoihw->boihw', routing, w5)
    outs = []
    for b in range(B):
        o = jax.lax.conv_general_dilated(
            x[b:b + 1], mixed[b],
            window_strides=(sh, sw),
            padding=[(ph, ph), (pw, pw)],
            rhs_dilation=(dh, dw),
            dimension_numbers=('NCHW', 'OIHW', 'NCHW'))
        outs.append(o)
    return jnp.concatenate(outs, axis=0)


if __name__ == "__main__":
    B, Cin, H, W = 2, 4, 16, 16
    Cout, E = 8, 4
    kh, kw = 3, 3

    key = jax.random.PRNGKey(0)
    k_x, k_w, k_r = jax.random.split(key, 3)

    x = jax.random.normal(k_x, (B, Cin, H, W), dtype=jnp.float32)

    # Deterministic init mimicking kaiming-uniform-ish bounds per expert.
    fan_in = Cin * kh * kw
    bound = 1.0 / np.sqrt(fan_in)
    expert_weight = jax.random.uniform(
        k_w, (E, Cout * Cin * kh * kw), dtype=jnp.float32,
        minval=-bound, maxval=bound)

    # CondConv routing weights are typically sigmoid-activated gates.
    routing = jax.nn.sigmoid(jax.random.normal(k_r, (B, E), dtype=jnp.float32))

    out = cond_conv2d_forward(
        x, routing, expert_weight,
        out_channels=Cout, kernel_size=(kh, kw),
        stride=(1, 1), dilation=(1, 1), num_experts=E)
    out = jax.block_until_ready(out)

    ref = _reference(
        x, routing, expert_weight,
        out_channels=Cout, kernel_size=(kh, kw),
        stride=(1, 1), dilation=(1, 1), num_experts=E)
    ref = jax.block_until_ready(ref)

    assert out.shape == (B, Cout, H, W), out.shape
    np.testing.assert_allclose(np.asarray(out), np.asarray(ref),
                               rtol=1e-4, atol=1e-4)
    print("KERNEL_OK")
</pallas_src>

<mosaic_0001>
module attributes {stable_mosaic.version = 11 : i64} {
  func.func @_cond_conv_kernel(%arg0: i32, %arg1: memref<8xf32, #tpu.memory_space<smem>>, %arg2: memref<4x9x8x4xf32, #tpu.memory_space<vmem>>, %arg3: memref<1x4x432xf32, #tpu.memory_space<vmem>>, %arg4: memref<1x8x384xf32, #tpu.memory_space<vmem>>) attributes {dimension_semantics = [#tpu.dimension_semantics<parallel>], iteration_bounds = array<i64: 2>, scalar_prefetch = 0 : i64, scratch_operands = 0 : i64, tpu.core_type = #tpu.core_type<tc>, window_params = [{transform_indices = @transform_0, window_bounds = array<i64: 8>}, {pipeline_mode = #tpu.pipeline_mode<synchronous>, transform_indices = @transform_1, window_bounds = array<i64: 4, 9, 8, 4>}, {transform_indices = @transform_2, window_bounds = array<i64: 1, 4, 432>}, {transform_indices = @transform_3, window_bounds = array<i64: 1, 8, 384>}]} {
    %c4_i32 = arith.constant 4 : i32
    %0 = arith.muli %arg0, %c4_i32 : i32
    %1 = arith.index_cast %0 : i32 to index
    %2 = memref.load %arg1[%1] : memref<8xf32, #tpu.memory_space<smem>>
    %c0 = arith.constant 0 : index
    %c0_0 = arith.constant 0 : index
    %c0_1 = arith.constant 0 : index
    %c0_2 = arith.constant 0 : index
    %3 = vector.load %arg2[%c0, %c0_0, %c0_1, %c0_2] : memref<4x9x8x4xf32, #tpu.memory_space<vmem>>, vector<1x9x8x4xf32>
    %4 = vector.shape_cast %3 : vector<1x9x8x4xf32> to vector<9x8x4xf32>
    %5 = vector.broadcast %2 : f32 to vector<9x8x4xf32>
    %6 = arith.mulf %5, %4 : vector<9x8x4xf32>
    %c4_i32_3 = arith.constant 4 : i32
    %7 = arith.muli %arg0, %c4_i32_3 : i32
    %c1_i32 = arith.constant 1 : i32
    %8 = arith.addi %7, %c1_i32 : i32
    %9 = arith.index_cast %8 : i32 to index
    %10 = memref.load %arg1[%9] : memref<8xf32, #tpu.memory_space<smem>>
    %c1 = arith.constant 1 : index
    %c0_4 = arith.constant 0 : index
    %c0_5 = arith.constant 0 : index
    %c0_6 = arith.constant 0 : index
    %11 = vector.load %arg2[%c1, %c0_4, %c0_5, %c0_6] : memref<4x9x8x4xf32, #tpu.memory_space<vmem>>, vector<1x9x8x4xf32>
    %12 = vector.shape_cast %11 : vector<1x9x8x4xf32> to vector<9x8x4xf32>
    %13 = vector.broadcast %10 : f32 to vector<9x8x4xf32>
    %14 = arith.mulf %13, %12 : vector<9x8x4xf32>
    %15 = arith.addf %6, %14 : vector<9x8x4xf32>
    %c4_i32_7 = arith.constant 4 : i32
    %16 = arith.muli %arg0, %c4_i32_7 : i32
    %c2_i32 = arith.constant 2 : i32
    %17 = arith.addi %16, %c2_i32 : i32
    %18 = arith.index_cast %17 : i32 to index
    %19 = memref.load %arg1[%18] : memref<8xf32, #tpu.memory_space<smem>>
    %c2 = arith.constant 2 : index
    %c0_8 = arith.constant 0 : index
    %c0_9 = arith.constant 0 : index
    %c0_10 = arith.constant 0 : index
    %20 = vector.load %arg2[%c2, %c0_8, %c0_9, %c0_10] : memref<4x9x8x4xf32, #tpu.memory_space<vmem>>, vector<1x9x8x4xf32>
    %21 = vector.shape_cast %20 : vector<1x9x8x4xf32> to vector<9x8x4xf32>
    %22 = vector.broadcast %19 : f32 to vector<9x8x4xf32>
    %23 = arith.mulf %22, %21 : vector<9x8x4xf32>
    %24 = arith.addf %15, %23 : vector<9x8x4xf32>
    %c4_i32_11 = arith.constant 4 : i32
    %25 = arith.muli %arg0, %c4_i32_11 : i32
    %c3_i32 = arith.constant 3 : i32
    %26 = arith.addi %25, %c3_i32 : i32
    %27 = arith.index_cast %26 : i32 to index
    %28 = memref.load %arg1[%27] : memref<8xf32, #tpu.memory_space<smem>>
    %c3 = arith.constant 3 : index
    %c0_12 = arith.constant 0 : index
    %c0_13 = arith.constant 0 : index
    %c0_14 = arith.constant 0 : index
    %29 = vector.load %arg2[%c3, %c0_12, %c0_13, %c0_14] : memref<4x9x8x4xf32, #tpu.memory_space<vmem>>, vector<1x9x8x4xf32>
    %30 = vector.shape_cast %29 : vector<1x9x8x4xf32> to vector<9x8x4xf32>
    %31 = vector.broadcast %28 : f32 to vector<9x8x4xf32>
    %32 = arith.mulf %31, %30 : vector<9x8x4xf32>
    %33 = arith.addf %24, %32 : vector<9x8x4xf32>
    %34 = vector.extract_strided_slice %33 {offsets = [0, 0, 0], sizes = [1, 8, 4], strides = [1, 1, 1]} : vector<9x8x4xf32> to vector<1x8x4xf32>
    %35 = vector.shape_cast %34 : vector<1x8x4xf32> to vector<8x4xf32>
    %c0_15 = arith.constant 0 : index
    %c0_16 = arith.constant 0 : index
    %c0_17 = arith.constant 0 : index
    %36 = vector.load %arg3[%c0_15, %c0_16, %c0_17] : memref<1x4x432xf32, #tpu.memory_space<vmem>>, vector<1x4x384xf32>
    %37 = vector.shape_cast %36 : vector<1x4x384xf32> to vector<4x384xf32>
    %cst = arith.constant dense<0.000000e+00> : vector<8x384xf32>
    %38 = tpu.matmul %35, %37, %cst {dimension_numbers = #tpu.dot_dimension_numbers<[1], [0], [0], [1], [0, 0, 1, 1], [], []>} : vector<8x4xf32>, vector<4x384xf32>, vector<8x384xf32> -> vector<8x384xf32>
    %c0_18 = arith.constant 0 : index
    %c0_19 = arith.constant 0 : index
    %c1_20 = arith.constant 1 : index
    %39 = vector.load %arg3[%c0_18, %c0_19, %c1_20] : memref<1x4x432xf32, #tpu.memory_space<vmem>>, vector<1x4x384xf32>
    %40 = vector.shape_cast %39 : vector<1x4x384xf32> to vector<4x384xf32>
    %41 = vector.extract_strided_slice %33 {offsets = [1, 0, 0], sizes = [1, 8, 4], strides = [1, 1, 1]} : vector<9x8x4xf32> to vector<1x8x4xf32>
    %42 = vector.shape_cast %41 : vector<1x8x4xf32> to vector<8x4xf32>
    %cst_21 = arith.constant dense<0.000000e+00> : vector<8x384xf32>
    %43 = tpu.matmul %42, %40, %cst_21 {dimension_numbers = #tpu.dot_dimension_numbers<[1], [0], [0], [1], [0, 0, 1, 1], [], []>} : vector<8x4xf32>, vector<4x384xf32>, vector<8x384xf32> -> vector<8x384xf32>
    %44 = arith.addf %38, %43 : vector<8x384xf32>
    %c0_22 = arith.constant 0 : index
    %c0_23 = arith.constant 0 : index
    %c2_24 = arith.constant 2 : index
    %45 = vector.load %arg3[%c0_22, %c0_23, %c2_24] : memref<1x4x432xf32, #tpu.memory_space<vmem>>, vector<1x4x384xf32>
    %46 = vector.shape_cast %45 : vector<1x4x384xf32> to vector<4x384xf32>
    %47 = vector.extract_strided_slice %33 {offsets = [2, 0, 0], sizes = [1, 8, 4], strides = [1, 1, 1]} : vector<9x8x4xf32> to vector<1x8x4xf32>
    %48 = vector.shape_cast %47 : vector<1x8x4xf32> to vector<8x4xf32>
    %cst_25 = arith.constant dense<0.000000e+00> : vector<8x384xf32>
    %49 = tpu.matmul %48, %46, %cst_25 {dimension_numbers = #tpu.dot_dimension_numbers<[1], [0], [0], [1], [0, 0, 1, 1], [], []>} : vector<8x4xf32>, vector<4x384xf32>, vector<8x384xf32> -> vector<8x384xf32>
    %50 = arith.addf %44, %49 : vector<8x384xf32>
    %c0_26 = arith.constant 0 : index
    %c0_27 = arith.constant 0 : index
    %c18 = arith.constant 18 : index
    %51 = vector.load %arg3[%c0_26, %c0_27, %c18] : memref<1x4x432xf32, #tpu.memory_space<vmem>>, vector<1x4x384xf32>
    %52 = vector.shape_cast %51 : vector<1x4x384xf32> to vector<4x384xf32>
    %53 = vector.extract_strided_slice %33 {offsets = [3, 0, 0], sizes = [1, 8, 4], strides = [1, 1, 1]} : vector<9x8x4xf32> to vector<1x8x4xf32>
    %54 = vector.shape_cast %53 : vector<1x8x4xf32> to vector<8x4xf32>
    %cst_28 = arith.constant dense<0.000000e+00> : vector<8x384xf32>
    %55 = tpu.matmul %54, %52, %cst_28 {dimension_numbers = #tpu.dot_dimension_numbers<[1], [0], [0], [1], [0, 0, 1, 1], [], []>} : vector<8x4xf32>, vector<4x384xf32>, vector<8x384xf32> -> vector<8x384xf32>
    %56 = arith.addf %50, %55 : vector<8x384xf32>
    %c0_29 = arith.constant 0 : index
    %c0_30 = arith.constant 0 : index
    %c19 = arith.constant 19 : index
    %57 = vector.load %arg3[%c0_29, %c0_30, %c19] : memref<1x4x432xf32, #tpu.memory_space<vmem>>, vector<1x4x384xf32>
    %58 = vector.shape_cast %57 : vector<1x4x384xf32> to vector<4x384xf32>
    %59 = vector.extract_strided_slice %33 {offsets = [4, 0, 0], sizes = [1, 8, 4], strides = [1, 1, 1]} : vector<9x8x4xf32> to vector<1x8x4xf32>
    %60 = vector.shape_cast %59 : vector<1x8x4xf32> to vector<8x4xf32>
    %cst_31 = arith.constant dense<0.000000e+00> : vector<8x384xf32>
    %61 = tpu.matmul %60, %58, %cst_31 {dimension_numbers = #tpu.dot_dimension_numbers<[1], [0], [0], [1], [0, 0, 1, 1], [], []>} : vector<8x4xf32>, vector<4x384xf32>, vector<8x384xf32> -> vector<8x384xf32>
    %62 = arith.addf %56, %61 : vector<8x384xf32>
    %c0_32 = arith.constant 0 : index
    %c0_33 = arith.constant 0 : index
    %c20 = arith.constant 20 : index
    %63 = vector.load %arg3[%c0_32, %c0_33, %c20] : memref<1x4x432xf32, #tpu.memory_space<vmem>>, vector<1x4x384xf32>
    %64 = vector.shape_cast %63 : vector<1x4x384xf32> to vector<4x384xf32>
    %65 = vector.extract_strided_slice %33 {offsets = [5, 0, 0], sizes = [1, 8, 4], strides = [1, 1, 1]} : vector<9x8x4xf32> to vector<1x8x4xf32>
    %66 = vector.shape_cast %65 : vector<1x8x4xf32> to vector<8x4xf32>
    %cst_34 = arith.constant dense<0.000000e+00> : vector<8x384xf32>
    %67 = tpu.matmul %66, %64, %cst_34 {dimension_numbers = #tpu.dot_dimension_numbers<[1], [0], [0], [1], [0, 0, 1, 1], [], []>} : vector<8x4xf32>, vector<4x384xf32>, vector<8x384xf32> -> vector<8x384xf32>
    %68 = arith.addf %62, %67 : vector<8x384xf32>
    %c0_35 = arith.constant 0 : index
    %c0_36 = arith.constant 0 : index
    %c36 = arith.constant 36 : index
    %69 = vector.load %arg3[%c0_35, %c0_36, %c36] : memref<1x4x432xf32, #tpu.memory_space<vmem>>, vector<1x4x384xf32>
    %70 = vector.shape_cast %69 : vector<1x4x384xf32> to vector<4x384xf32>
    %71 = vector.extract_strided_slice %33 {offsets = [6, 0, 0], sizes = [1, 8, 4], strides = [1, 1, 1]} : vector<9x8x4xf32> to vector<1x8x4xf32>
    %72 = vector.shape_cast %71 : vector<1x8x4xf32> to vector<8x4xf32>
    %cst_37 = arith.constant dense<0.000000e+00> : vector<8x384xf32>
    %73 = tpu.matmul %72, %70, %cst_37 {dimension_numbers = #tpu.dot_dimension_numbers<[1], [0], [0], [1], [0, 0, 1, 1], [], []>} : vector<8x4xf32>, vector<4x384xf32>, vector<8x384xf32> -> vector<8x384xf32>
    %74 = arith.addf %68, %73 : vector<8x384xf32>
    %c0_38 = arith.constant 0 : index
    %c0_39 = arith.constant 0 : index
    %c37 = arith.constant 37 : index
    %75 = vector.load %arg3[%c0_38, %c0_39, %c37] : memref<1x4x432xf32, #tpu.memory_space<vmem>>, vector<1x4x384xf32>
    %76 = vector.shape_cast %75 : vector<1x4x384xf32> to vector<4x384xf32>
    %77 = vector.extract_strided_slice %33 {offsets = [7, 0, 0], sizes = [1, 8, 4], strides = [1, 1, 1]} : vector<9x8x4xf32> to vector<1x8x4xf32>
    %78 = vector.shape_cast %77 : vector<1x8x4xf32> to vector<8x4xf32>
    %cst_40 = arith.constant dense<0.000000e+00> : vector<8x384xf32>
    %79 = tpu.matmul %78, %76, %cst_40 {dimension_numbers = #tpu.dot_dimension_numbers<[1], [0], [0], [1], [0, 0, 1, 1], [], []>} : vector<8x4xf32>, vector<4x384xf32>, vector<8x384xf32> -> vector<8x384xf32>
    %80 = arith.addf %74, %79 : vector<8x384xf32>
    %c0_41 = arith.constant 0 : index
    %c0_42 = arith.constant 0 : index
    %c38 = arith.constant 38 : index
    %81 = vector.load %arg3[%c0_41, %c0_42, %c38] : memref<1x4x432xf32, #tpu.memory_space<vmem>>, vector<1x4x384xf32>
    %82 = vector.shape_cast %81 : vector<1x4x384xf32> to vector<4x384xf32>
    %83 = vector.extract_strided_slice %33 {offsets = [8, 0, 0], sizes = [1, 8, 4], strides = [1, 1, 1]} : vector<9x8x4xf32> to vector<1x8x4xf32>
    %84 = vector.shape_cast %83 : vector<1x8x4xf32> to vector<8x4xf32>
    %cst_43 = arith.constant dense<0.000000e+00> : vector<8x384xf32>
    %85 = tpu.matmul %84, %82, %cst_43 {dimension_numbers = #tpu.dot_dimension_numbers<[1], [0], [0], [1], [0, 0, 1, 1], [], []>} : vector<8x4xf32>, vector<4x384xf32>, vector<8x384xf32> -> vector<8x384xf32>
    %86 = arith.addf %80, %85 : vector<8x384xf32>
    %c0_44 = arith.constant 0 : index
    %c0_45 = arith.constant 0 : index
    %c0_46 = arith.constant 0 : index
    %87 = vector.load %arg4[%c0_44, %c0_45, %c0_46] : memref<1x8x384xf32, #tpu.memory_space<vmem>>, vector<1x8x384xf32>
    %88 = vector.shape_cast %87 : vector<1x8x384xf32> to vector<8x384xf32>
    %89 = vector.shape_cast %86 : vector<8x384xf32> to vector<1x8x384xf32>
    tpu.vector_store %arg4[%c0_44, %c0_45, %c0_46], %89 {strides = array<i32>} : memref<1x8x384xf32, #tpu.memory_space<vmem>>, vector<1x8x384xf32>,
    return
  }
  func.func @transform_0(%arg0: i32) -> i32 {
    %c0_i32 = arith.constant 0 : i32
    %c0_i32_0 = arith.constant 0 : i32
    return %c0_i32 : i32
  }
  func.func @transform_1(%arg0: i32) -> (i32, i32, i32, i32) {
    %c0_i32 = arith.constant 0 : i32
    %c0_i32_0 = arith.constant 0 : i32
    %c0_i32_1 = arith.constant 0 : i32
    %c0_i32_2 = arith.constant 0 : i32
    %c0_i32_3 = arith.constant 0 : i32
    return %c0_i32, %c0_i32_0, %c0_i32_1, %c0_i32_2 : i32, i32, i32, i32
  }
  func.func @transform_2(%arg0: i32) -> (i32, i32, i32) {
    %c0_i32 = arith.constant 0 : i32
    %c0_i32_0 = arith.constant 0 : i32
    %c0_i32_1 = arith.constant 0 : i32
    return %arg0, %c0_i32, %c0_i32_0 : i32, i32, i32
  }
  func.func @transform_3(%arg0: i32) -> (i32, i32, i32) {
    %c0_i32 = arith.constant 0 : i32
    %c0_i32_0 = arith.constant 0 : i32
    %c0_i32_1 = arith.constant 0 : i32
    return %arg0, %c0_i32, %c0_i32_0 : i32, i32, i32
  }
}

</mosaic_0001>

<llo_original>
// kernel: tpu_custom_call.1
$region0: #{tpu_custom_call.1}
  #allocation0 [shape = 'u32[]', space=smem, size = 0x4, offset = 0x4, fixed_abs, tag = 'smem constant byte address 0x4 - core index']
  #allocation1 [shape = 'u32[144,128]{1,0:T(1,128)}', space=vmem, size = 0x12000, scoped, tag = 'internal scratch']
  %s0 = inlined_call_operand.vmem [shape: f32[8], index: 0, kind: input, shape index: {}]
  %s1 = inlined_call_operand.vmem [shape: f32[4,9,8,4], index: 1, kind: input, shape index: {}]
  %s2 = inlined_call_operand.vmem [shape: f32[2,4,432], index: 2, kind: input, shape index: {}]
  %s3 = inlined_call_operand.hbm [shape: f32[2,8,384], index: 3, kind: output, shape index: {}]
  %s4 = sld [smem:[#allocation0]]
  $region49: #{tpu_custom_call.1} parent=0
    _
  %s6 = ssub.s32 1, %s4
  %s7 = scalar_select 0, %s6, %s4
  $region1: #{tpu_custom_call.1} parent=0
    #allocation2 [shape = 'u8[512]{0}', space=smem, size = 0x200, scoped, tag = 'input window, operand 0, single buffered']
    #allocation3 [shape = 's32[2]{0}', space=sflag, size = 0x8, scoped, tag = 'scoped memory for tpu_custom_call.1']
    #allocation4 [shape = 's32[2]{0}', space=sflag, size = 0x8, scoped, tag = 'scoped memory for tpu_custom_call.1']
    #allocation5 [shape = 'u8[24576]{0}', space=vmem, size = 0x6000, scoped, tag = 'output window, operand 0']
    %8 = vsyncpa [#allocation4], 0
    %9 = vsyncpa [#allocation3], 0
    %s10 = scalar_lea.sflag [#allocation3], 1
    %11 = vsyncpa %s10, 0
    loop: start=0, step=1, limit=4
    $region2: #{tpu_custom_call.1} parent=1 // loop_pre_header
      _
    $region3: #{tpu_custom_call.1} parent=1 // loop_header
      %s13 = sphi 0, %s17
      %p14 = scmp.ge.s32.totalorder %s13, 4
      %s21 = sphi 0, %s21
      %s23 = sphi 0, %s21
      %s24 = sphi 0, %s23
      %s38 = sphi 0, %s24
      %s42 = sphi 0, %s42
      %s44 = sphi 0, %s42
      %s45 = sphi 0, %s44
      %s59 = sphi 0, %s45
      %s65 = sphi 0, %s67
      %s68 = sphi 0, %s65
      %s69 = sphi 0, %s68
      %s85 = sphi 0, %s69
      %s91 = sphi 0, %s93
      %s94 = sphi 0, %s91
      %s95 = sphi 0, %s94
      %s111 = sphi 0, %s95
    $region4: #{tpu_custom_call.1} parent=1 // loop_header_branch
      %16 = sbr.rel (%p14) target = $region8
    $region5: #{tpu_custom_call.1} parent=1 // loop_body
      %s18 = ssub.s32 %s13, 1
      %s19 = ssub.s32 %s13, 2
      %s20 = sadd.s32 %s13, 1
      %s22 = sadd.s32 %s21, 1
      %p25 = scmp.eq.s32.totalorder %s13, 1
      %p26 = scmp.ne.s32.totalorder %s21, %s23
      %p27 = scmp.eq.s32.totalorder %s13, 0
      %p28 = por %p26, %p27
      %p29 = scmp.ne.s32.totalorder %s21, %s23
      %p30 = scmp.eq.s32.totalorder %s18, 1
      %p31 = por %p29, %p30
      %p32 = scmp.ne.s32.totalorder %s23, %s24
      %p33 = scmp.eq.s32.totalorder %s18, 0
      %p34 = por %p32, %p33
      %p35 = scmp.ne.s32.totalorder %s23, %s24
      %p36 = scmp.eq.s32.totalorder %s19, 1
      %p37 = por %p35, %p36
      %p39 = scmp.ne.s32.totalorder %s24, %s38
      %p40 = scmp.eq.s32.totalorder %s19, 0
      %p41 = por %p39, %p40
      %s43 = sadd.s32 %s42, 1
      %p46 = scmp.eq.s32.totalorder %s13, 1
      %p47 = scmp.ne.s32.totalorder %s42, %s44
      %p48 = scmp.eq.s32.totalorder %s13, 0
      %p49 = por %p47, %p48
      %p50 = scmp.ne.s32.totalorder %s42, %s44
      %p51 = scmp.eq.s32.totalorder %s18, 1
      %p52 = por %p50, %p51
      %p53 = scmp.ne.s32.totalorder %s44, %s45
      %p54 = scmp.eq.s32.totalorder %s18, 0
      %p55 = por %p53, %p54
      %p56 = scmp.ne.s32.totalorder %s44, %s45
      %p57 = scmp.eq.s32.totalorder %s19, 1
      %p58 = por %p56, %p57
      %p60 = scmp.ne.s32.totalorder %s45, %s59
      %p61 = scmp.eq.s32.totalorder %s19, 0
      %p62 = por %p60, %p61
      %s63 = ssub.s32 %s13, %s20
      %p64 = scmp.eq.s32.totalorder %s63, 0
      %s66 = sadd.s32 %s65, 1
      %s67 = scalar_select %p64, %s65, %s66
      %p70 = pneg %p64
      %p71 = scmp.eq.s32.totalorder %s13, 1
      %p72 = por %p70, %p71
      %p73 = scmp.ne.s32.totalorder %s65, %s68
      %p74 = scmp.eq.s32.totalorder %s13, 0
      %p75 = por %p73, %p74
      %p76 = scmp.ne.s32.totalorder %s65, %s68
      %p77 = scmp.eq.s32.totalorder %s18, 1
      %p78 = por %p76, %p77
      %p79 = scmp.ne.s32.totalorder %s68, %s69
      %p80 = scmp.eq.s32.totalorder %s18, 0
      %p81 = por %p79, %p80
      %p82 = scmp.ne.s32.totalorder %s68, %s69
      %p83 = scmp.eq.s32.totalorder %s19, 1
      %p84 = por %p82, %p83
      %p86 = scmp.ne.s32.totalorder %s69, %s85
      %p87 = scmp.eq.s32.totalorder %s19, 0
      %p88 = por %p86, %p87
      %s89 = ssub.s32 %s13, %s20
      %p90 = scmp.eq.s32.totalorder %s89, 0
      %s92 = sadd.s32 %s91, 1
      %s93 = scalar_select %p90, %s91, %s92
      %p96 = pneg %p90
      %p97 = scmp.eq.s32.totalorder %s13, 1
      %p98 = por %p96, %p97
      %p99 = scmp.ne.s32.totalorder %s91, %s94
      %p100 = scmp.eq.s32.totalorder %s13, 0
      %p101 = por %p99, %p100
      %p102 = scmp.ne.s32.totalorder %s91, %s94
      %p103 = scmp.eq.s32.totalorder %s18, 1
      %p104 = por %p102, %p103
      %p105 = scmp.ne.s32.totalorder %s94, %s95
      %p106 = scmp.eq.s32.totalorder %s18, 0
      %p107 = por %p105, %p106
      %p108 = scmp.ne.s32.totalorder %s94, %s95
      %p109 = scmp.eq.s32.totalorder %s19, 1
      %p110 = por %p108, %p109
      %p112 = scmp.ne.s32.totalorder %s95, %s111
      %p113 = scmp.eq.s32.totalorder %s19, 0
      %p114 = por %p112, %p113
      %p115 = scmp.le.s32.totalorder 1, %s13
      %p116 = scmp.lt.s32.totalorder %s13, 3
      %p117 = pnand %p115, %p116
      %p118 = pneg %p117
      // Predicated region
      $region9: #{tpu_custom_call.1} parent=5 // pred_check
        _
      $region10: #{tpu_custom_call.1} parent=5 // pred_check_branch
        %120 = sbr.rel (%p117) target = $region12
      $region11: #{tpu_custom_call.1} parent=5 // pred_region
        %s121 = ssub.s32 %s13, 1
        // Predicated region
        $region13: #{tpu_custom_call.1} parent=11 // pred_check
          %p122 = pneg %p34
        $region14: #{tpu_custom_call.1} parent=11 // pred_check_branch
          %124 = sbr.rel (%p122) target = $region16
        $region15: #{tpu_custom_call.1} parent=11 // pred_region
          %s126 = ssub.s32 16, 16
          %127 = vsyncadd [#allocation4], %s126
          %s129 = sshll.u32 %s0, 4
          %s130 = int_to_ptr.vmem [resolvable:$true] %s129
          %132 = dma.vmem_to_smem %s130, 16, [#allocation2], [#allocation4]
        $region16: #{tpu_custom_call.1} parent=11 // pred_fallthru
          _
        // Predicated region
        $region17: #{tpu_custom_call.1} parent=11 // pred_check
          %p133 = pneg %p55
        $region18: #{tpu_custom_call.1} parent=11 // pred_check_branch
          %135 = sbr.rel (%p133) target = $region20
        $region19: #{tpu_custom_call.1} parent=11 // pred_region
          _
        $region20: #{tpu_custom_call.1} parent=11 // pred_fallthru
          _
      $region12: #{tpu_custom_call.1} parent=5 // pred_fallthru
        _
      %p136 = scmp.lt.s32.totalorder %s13, 2
      // Predicated region
      $region21: #{tpu_custom_call.1} parent=5 // pred_check
        %p137 = pneg %p136
      $region22: #{tpu_custom_call.1} parent=5 // pred_check_branch
        %139 = sbr.rel (%p137) target = $region24
      $region23: #{tpu_custom_call.1} parent=5 // pred_region
        // Predicated region
        $region25: #{tpu_custom_call.1} parent=23 // pred_check
          %p140 = pneg %p75
        $region26: #{tpu_custom_call.1} parent=23 // pred_check_branch
          %142 = sbr.rel (%p140) target = $region28
        $region27: #{tpu_custom_call.1} parent=23 // pred_region
          %p143 = scmp.lt.s32.totalorder %s13, 1
          %s144 = scalar_select %p143, %s13, 1
          %s145 = smul.addr %s144, 4
          %s146 = smul.addr %s145, 4
          %s147 = scalar_lea.vmem %s2, %s146
        $region28: #{tpu_custom_call.1} parent=23 // pred_fallthru
          _
      $region24: #{tpu_custom_call.1} parent=5 // pred_fallthru
        _
      %p148 = scmp.le.s32.totalorder 1, %s13
      %p149 = scmp.lt.s32.totalorder %s13, 3
      %p150 = pnand %p148, %p149
      %p151 = pneg %p150
      // Predicated region
      $region29: #{tpu_custom_call.1} parent=5 // pred_check
        _
      $region30: #{tpu_custom_call.1} parent=5 // pred_check_branch
        %153 = sbr.rel (%p150) target = $region32
      $region31: #{tpu_custom_call.1} parent=5 // pred_region
        %s154 = ssub.s32 %s13, 1
        // Predicated region
        $region33: #{tpu_custom_call.1} parent=31 // pred_check
          %p155 = pneg %p34
        $region34: #{tpu_custom_call.1} parent=31 // pred_check_branch
          %157 = sbr.rel (%p155) target = $region36
        $region35: #{tpu_custom_call.1} parent=31 // pred_region
          %158 = dma.done [#allocation4], 16
        $region36: #{tpu_custom_call.1} parent=31 // pred_fallthru
          _
        %159 = sfence
        %p160 = pneg %p34
        %p161 = pneg %p31
        %p162 = pneg %p55
        %p163 = pneg %p52
        %p164 = scmp.lt.s32.totalorder %s18, 1
        %s165 = scalar_select %p164, %s18, 1
        %s166 = smul.addr %s165, 4
        %s167 = smul.addr %s166, 4
        %s168 = scalar_lea.vmem %s2, %s167
        %p169 = pneg %p81
        %p170 = pneg %p78
        %p171 = pneg %p107
        %p172 = pneg %p104
        %s173 = sand.u32 %s94, 1
        %s174 = scalar_lea.sflag [#allocation3], %s173
        %s175 = sand.u32 %s94, 1
        %s176 = smul.addr %s175, 24
        %s177 = scalar_lea.vmem [#allocation5], %s176
        %p178 = scmp.lt.s32.totalorder %s18, 1
        %s179 = scalar_select %p178, %s18, 1
        %s180 = smul.addr %s179, 4
        %s181 = smul.addr %s180, 4
        %s182 = scalar_lea.vmem %s2, %s181
        %s183 = smul.u32 %s18, 4
        %s184 = sld [smem:[#allocation2 + %s183]]
        %v185 = vld [vmem:[%s1] sm:$0xff]
        %v186 = vld [vmem:[%s1 + $0x8] sm:$0xff]
        %v187 = vld [vmem:[%s1 + $0x10] sm:$0xff]
        %v188 = vld [vmem:[%s1 + $0x18] sm:$0xff]
        %v189 = vld [vmem:[%s1 + $0x20] sm:$0xff]
        %v190 = vld [vmem:[%s1 + $0x28] sm:$0xff]
        %v191 = vld [vmem:[%s1 + $0x30] sm:$0xff]
        %v192 = vld [vmem:[%s1 + $0x38] sm:$0xff]
        %v193 = vld [vmem:[%s1 + $0x40] sm:$0xff]
        %v194 = vstv %s184
        %v195 = vmul.f32 %v194, %v185
        %v196 = vmul.f32 %v194, %v186
        %v197 = vmul.f32 %v194, %v187
        %v198 = vmul.f32 %v194, %v188
        %v199 = vmul.f32 %v194, %v189
        %v200 = vmul.f32 %v194, %v190
        %v201 = vmul.f32 %v194, %v191
        %v202 = vmul.f32 %v194, %v192
        %v203 = vmul.f32 %v194, %v193
        %s204 = sadd.s32 %s183, 1
        %s205 = sld [smem:[#allocation2 + %s204]]
        %s206 = scalar_lea.vmem %s1, 72
        %v207 = vld [vmem:[%s206] sm:$0xff]
        %v208 = vld [vmem:[%s206 + $0x8] sm:$0xff]
        %v209 = vld [vmem:[%s206 + $0x10] sm:$0xff]
        %v210 = vld [vmem:[%s206 + $0x18] sm:$0xff]
        %v211 = vld [vmem:[%s206 + $0x20] sm:$0xff]
        %v212 = vld [vmem:[%s206 + $0x28] sm:$0xff]
        %v213 = vld [vmem:[%s206 + $0x30] sm:$0xff]
        %v214 = vld [vmem:[%s206 + $0x38] sm:$0xff]
        %v215 = vld [vmem:[%s206 + $0x40] sm:$0xff]
        %v216 = vstv %s205
        %v217 = vmul.f32 %v216, %v207
        %v218 = vmul.f32 %v216, %v208
        %v219 = vmul.f32 %v216, %v209
        %v220 = vmul.f32 %v216, %v210
        %v221 = vmul.f32 %v216, %v211
        %v222 = vmul.f32 %v216, %v212
        %v223 = vmul.f32 %v216, %v213
        %v224 = vmul.f32 %v216, %v214
        %v225 = vmul.f32 %v216, %v215
        %v226 = vadd.f32 %v195, %v217
        %v227 = vadd.f32 %v196, %v218
        %v228 = vadd.f32 %v197, %v219
        %v229 = vadd.f32 %v198, %v220
        %v230 = vadd.f32 %v199, %v221
        %v231 = vadd.f32 %v200, %v222
        %v232 = vadd.f32 %v201, %v223
        %v233 = vadd.f32 %v202, %v224
        %v234 = vadd.f32 %v203, %v225
        %s235 = sadd.s32 %s183, 2
        %s236 = sld [smem:[#allocation2 + %s235]]
        %s237 = scalar_lea.vmem %s1, 144
        %v238 = vld [vmem:[%s237] sm:$0xff]
        %v239 = vld [vmem:[%s237 + $0x8] sm:$0xff]
        %v240 = vld [vmem:[%s237 + $0x10] sm:$0xff]
        %v241 = vld [vmem:[%s237 + $0x18] sm:$0xff]
        %v242 = vld [vmem:[%s237 + $0x20] sm:$0xff]
        %v243 = vld [vmem:[%s237 + $0x28] sm:$0xff]
        %v244 = vld [vmem:[%s237 + $0x30] sm:$0xff]
        %v245 = vld [vmem:[%s237 + $0x38] sm:$0xff]
        %v246 = vld [vmem:[%s237 + $0x40] sm:$0xff]
        %v247 = vstv %s236
        %v248 = vmul.f32 %v247, %v238
        %v249 = vmul.f32 %v247, %v239
        %v250 = vmul.f32 %v247, %v240
        %v251 = vmul.f32 %v247, %v241
        %v252 = vmul.f32 %v247, %v242
        %v253 = vmul.f32 %v247, %v243
        %v254 = vmul.f32 %v247, %v244
        %v255 = vmul.f32 %v247, %v245
        %v256 = vmul.f32 %v247, %v246
        %v257 = vadd.f32 %v226, %v248
        %v258 = vadd.f32 %v227, %v249
        %v259 = vadd.f32 %v228, %v250
        %v260 = vadd.f32 %v229, %v251
        %v261 = vadd.f32 %v230, %v252
        %v262 = vadd.f32 %v231, %v253
        %v263 = vadd.f32 %v232, %v254
        %v264 = vadd.f32 %v233, %v255
        %v265 = vadd.f32 %v234, %v256
        %s266 = sadd.s32 %s183, 3
        %s267 = sld [smem:[#allocation2 + %s266]]
        %s268 = scalar_lea.vmem %s1, 216
        %v269 = vld [vmem:[%s268] sm:$0xff]
        %v270 = vld [vmem:[%s268 + $0x8] sm:$0xff]
        %v271 = vld [vmem:[%s268 + $0x10] sm:$0xff]
        %v272 = vld [vmem:[%s268 + $0x18] sm:$0xff]
        %v273 = vld [vmem:[%s268 + $0x20] sm:$0xff]
        %v274 = vld [vmem:[%s268 + $0x28] sm:$0xff]
        %v275 = vld [vmem:[%s268 + $0x30] sm:$0xff]
        %v276 = vld [vmem:[%s268 + $0x38] sm:$0xff]
        %v277 = vld [vmem:[%s268 + $0x40] sm:$0xff]
        %v278 = vstv %s267
        %v279 = vmul.f32 %v278, %v269
        %v280 = vmul.f32 %v278, %v270
        %v281 = vmul.f32 %v278, %v271
        %v282 = vmul.f32 %v278, %v272
        %v283 = vmul.f32 %v278, %v273
        %v284 = vmul.f32 %v278, %v274
        %v285 = vmul.f32 %v278, %v275
        %v286 = vmul.f32 %v278, %v276
        %v287 = vmul.f32 %v278, %v277
        %v288 = vadd.f32 %v257, %v279
        %v289 = vadd.f32 %v258, %v280
        %v290 = vadd.f32 %v259, %v281
        %v291 = vadd.f32 %v260, %v282
        %v292 = vadd.f32 %v261, %v283
        %v293 = vadd.f32 %v262, %v284
        %v294 = vadd.f32 %v263, %v285
        %v295 = vadd.f32 %v264, %v286
        %v296 = vadd.f32 %v265, %v287
        %v297 = vld [vmem:[%s182] sm:$0xff]
        %v298 = vld [vmem:[%s182 + $0x8] sm:$0xf]
        %v299 = vld [vmem:[%s182 + $0x8] sm:$0xff]
        %v302 = vcombine.high %v297, %v297
        %v303 = vcombine.high %v299, %v299
        %304 = vrot.lane.b32.xlu0 %v297, 127
        %v305 = vpop.permute.xlu0 %304
        %306 = vrot.lane.b32.xlu0 %v302, 127
        %v307 = vpop.permute.xlu0 %306
        %308 = vrot.lane.b32.xlu0 %v299, 127
        %v309 = vpop.permute.xlu0 %308
        %310 = vrot.lane.b32.xlu0 %v303, 127
        %v311 = vpop.permute.xlu0 %310
        %vm312 = vcmask 1039360
        %v313 = vsel %vm312, %v305, %v307
        %v314 = vsel %vm312, %v307, %v309
        %v315 = vsel %vm312, %v309, %v311
        %vm316 = vcmask 31744
        %v318 = vsel %vm316, %v289, 0
        %vm320 = vcmask 1043456
        %v321 = vsel %vm320, %v313, 0
        %v323 = vsel %vm320, %v314, 0
        %v325 = vsel %vm320, %v315, 0
        %327 = vmatprep.subr.mxu0 0.0
        %328 = vmatpush1.msra.mxu0 0.0
        %329 = vmatprep.subr.mxu0 0.0
        %330 = vmatpush1.msra.mxu0 0.0
        %331 = vmatprep.subr.mxu0 0.0
        %332 = vmatpush1.msra.mxu0 0.0
        %333 = vmatprep.subr.mxu0 0.0
        %334 = vmatpush1.msra.mxu0 0.0
        %335 = vmatprep.subr.mxu0 0.0
        %336 = vmatpush1.msra.mxu0 0.0
        %337 = vmatprep.subr.mxu0 0.0
        %338 = vmatpush1.msra.mxu0 0.0
        %339 = vmatprep.subr.mxu0 0.0
        %340 = vmatpush1.msra.mxu0 0.0
        %341 = vmatprep.subr.mxu0 0.0
        %342 = vmatpush1.msra.mxu0 0.0
        %343 = vmatprep.subr.mxu0 0.0
        %344 = vmatpush1.msra.mxu0 0.0
        %345 = vmatprep.subr.mxu0 0.0
        %346 = vmatpush1.msra.mxu0 0.0
        %347 = vmatprep.subr.mxu0 0.0
        %348 = vmatpush1.msra.mxu0 0.0
        %349 = vmatprep.subr.mxu0 0.0
        %350 = vmatpush1.msra.mxu0 0.0
        %351 = vmatprep.subr.mxu0 0.0
        %352 = vmatpush1.msra.mxu0 0.0
        %353 = vmatprep.subr.mxu0 0.0
        %354 = vmatpush1.msra.mxu0 0.0
        %355 = vmatprep.subr.mxu0 0.0
        %356 = vmatpush1.msra.mxu0 0.0
        %357 = vmatprep.subr.mxu0 %v323
        %358 = vmatpush1.msra.mxu0 %v321
        %359 = vmatprep.subr.mxu0 0.0
        %360 = vmatpush2.msra.mxu0 0.0
        %361 = vmatprep.subr.mxu0 0.0
        %362 = vmatpush2.msra.mxu0 0.0
        %363 = vmatprep.subr.mxu0 0.0
        %364 = vmatpush2.msra.mxu0 0.0
        %365 = vmatprep.subr.mxu0 0.0
        %366 = vmatpush2.msra.mxu0 0.0
        %367 = vmatprep.subr.mxu0 0.0
        %368 = vmatpush2.msra.mxu0 0.0
        %369 = vmatprep.subr.mxu0 0.0
        %370 = vmatpush2.msra.mxu0 0.0
        %371 = vmatprep.subr.mxu0 0.0
        %372 = vmatpush2.msra.mxu0 0.0
        %373 = vmatprep.subr.mxu0 0.0
        %374 = vmatpush2.msra.mxu0 0.0
        %375 = vmatprep.subr.mxu0 0.0
        %376 = vmatpush2.msra.mxu0 0.0
        %377 = vmatprep.subr.mxu0 0.0
        %378 = vmatpush2.msra.mxu0 0.0
        %379 = vmatprep.subr.mxu0 0.0
        %380 = vmatpush2.msra.mxu0 0.0
        %381 = vmatprep.subr.mxu0 0.0
        %382 = vmatpush2.msra.mxu0 0.0
        %383 = vmatprep.subr.mxu0 0.0
        %384 = vmatpush2.msra.mxu0 0.0
        %385 = vmatprep.subr.mxu0 0.0
        %386 = vmatpush2.msra.mxu0 0.0
        %387 = vmatprep.subr.mxu0 0.0
        %388 = vmatpush2.msra.mxu0 0.0
        %389 = vmatprep.subr.mxu0 0.0
        %390 = vmatpush2.msra.mxu0 0.0
        %391 = vmatprep.mubr.f32.mxu0 0.0
        %392 = vmatmul.mubr.f32.gmra.mxu0 %v318
        %v393 = vpop.f32.mrf.mxu0
        %v394 = vadd.f32 0.0, %v393
        %v395 = vpop.f32.mrf.mxu0
        %v396 = vadd.f32 0.0, %v395
        %397 = vdwg.mxu0
        %398 = vmatprep.subr.mxu0 0.0
        %399 = vmatpush1.msra.mxu0 0.0
        %400 = vmatprep.subr.mxu0 0.0
        %401 = vmatpush1.msra.mxu0 0.0
        %402 = vmatprep.subr.mxu0 0.0
        %403 = vmatpush1.msra.mxu0 0.0
        %404 = vmatprep.subr.mxu0 0.0
        %405 = vmatpush1.msra.mxu0 0.0
        %406 = vmatprep.subr.mxu0 0.0
        %407 = vmatpush1.msra.mxu0 0.0
        %408 = vmatprep.subr.mxu0 0.0
        %409 = vmatpush1.msra.mxu0 0.0
        %410 = vmatprep.subr.mxu0 0.0
        %411 = vmatpush1.msra.mxu0 0.0
        %412 = vmatprep.subr.mxu0 0.0
        %413 = vmatpush1.msra.mxu0 0.0
        %414 = vmatprep.subr.mxu0 0.0
        %415 = vmatpush1.msra.mxu0 0.0
        %416 = vmatprep.subr.mxu0 0.0
        %417 = vmatpush1.msra.mxu0 0.0
        %418 = vmatprep.subr.mxu0 0.0
        %419 = vmatpush1.msra.mxu0 0.0
        %420 = vmatprep.subr.mxu0 0.0
        %421 = vmatpush1.msra.mxu0 0.0
        %422 = vmatprep.subr.mxu0 0.0
        %423 = vmatpush1.msra.mxu0 0.0
        %424 = vmatprep.subr.mxu0 0.0
        %425 = vmatpush1.msra.mxu0 0.0
        %426 = vmatprep.subr.mxu0 0.0
        %427 = vmatpush1.msra.mxu0 0.0
        %428 = vmatprep.subr.mxu0 0.0
        %429 = vmatpush1.msra.mxu0 %v325
        %430 = vmatprep.subr.mxu0 0.0
        %431 = vmatpush2.msra.mxu0 0.0
        %432 = vmatprep.subr.mxu0 0.0
        %433 = vmatpush2.msra.mxu0 0.0
        %434 = vmatprep.subr.mxu0 0.0
        %435 = vmatpush2.msra.mxu0 0.0
        %436 = vmatprep.subr.mxu0 0.0
        %437 = vmatpush2.msra.mxu0 0.0
        %438 = vmatprep.subr.mxu0 0.0
        %439 = vmatpush2.msra.mxu0 0.0
        %440 = vmatprep.subr.mxu0 0.0
        %441 = vmatpush2.msra.mxu0 0.0
        %442 = vmatprep.subr.mxu0 0.0
        %443 = vmatpush2.msra.mxu0 0.0
        %444 = vmatprep.subr.mxu0 0.0
        %445 = vmatpush2.msra.mxu0 0.0
        %446 = vmatprep.subr.mxu0 0.0
        %447 = vmatpush2.msra.mxu0 0.0
        %448 = vmatprep.subr.mxu0 0.0
        %449 = vmatpush2.msra.mxu0 0.0
        %450 = vmatprep.subr.mxu0 0.0
        %451 = vmatpush2.msra.mxu0 0.0
        %452 = vmatprep.subr.mxu0 0.0
        %453 = vmatpush2.msra.mxu0 0.0
        %454 = vmatprep.subr.mxu0 0.0
        %455 = vmatpush2.msra.mxu0 0.0
        %456 = vmatprep.subr.mxu0 0.0
        %457 = vmatpush2.msra.mxu0 0.0
        %458 = vmatprep.subr.mxu0 0.0
        %459 = vmatpush2.msra.mxu0 0.0
        %460 = vmatprep.subr.mxu0 0.0
        %461 = vmatpush2.msra.mxu0 0.0
        %462 = vmatprep.mubr.f32.mxu0 0.0
        %463 = vmatmul.mubr.f32.gmra.mxu0 %v318
        %v464 = vpop.f32.mrf.mxu0
        %v465 = vadd.f32 0.0, %v464
        %v466 = vpop.f32.mrf.mxu0
        %467 = vdwg.mxu0
        %v470 = vsel %vm316, %v288, 0
        %v472 = vsel %vm320, %v297, 0
        %v474 = vsel %vm320, %v302, 0
        %v476 = vsel %vm320, %v298, 0
        %478 = vmatprep.subr.mxu0 0.0
        %479 = vmatpush1.msra.mxu0 0.0
        %480 = vmatprep.subr.mxu0 0.0
        %481 = vmatpush1.msra.mxu0 0.0
        %482 = vmatprep.subr.mxu0 0.0
        %483 = vmatpush1.msra.mxu0 0.0
        %484 = vmatprep.subr.mxu0 0.0
        %485 = vmatpush1.msra.mxu0 0.0
        %486 = vmatprep.subr.mxu0 0.0
        %487 = vmatpush1.msra.mxu0 0.0
        %488 = vmatprep.subr.mxu0 0.0
        %489 = vmatpush1.msra.mxu0 0.0
        %490 = vmatprep.subr.mxu0 0.0
        %491 = vmatpush1.msra.mxu0 0.0
        %492 = vmatprep.subr.mxu0 0.0
        %493 = vmatpush1.msra.mxu0 0.0
        %494 = vmatprep.subr.mxu0 0.0
        %495 = vmatpush1.msra.mxu0 0.0
        %496 = vmatprep.subr.mxu0 0.0
        %497 = vmatpush1.msra.mxu0 0.0
        %498 = vmatprep.subr.mxu0 0.0
        %499 = vmatpush1.msra.mxu0 0.0
        %500 = vmatprep.subr.mxu0 0.0
        %501 = vmatpush1.msra.mxu0 0.0
        %502 = vmatprep.subr.mxu0 0.0
        %503 = vmatpush1.msra.mxu0 0.0
        %504 = vmatprep.subr.mxu0 0.0
        %505 = vmatpush1.msra.mxu0 0.0
        %506 = vmatprep.subr.mxu0 0.0
        %507 = vmatpush1.msra.mxu0 0.0
        %508 = vmatprep.subr.mxu0 %v474
        %509 = vmatpush1.msra.mxu0 %v472
        %510 = vmatprep.subr.mxu0 0.0
        %511 = vmatpush2.msra.mxu0 0.0
        %512 = vmatprep.subr.mxu0 0.0
        %513 = vmatpush2.msra.mxu0 0.0
        %514 = vmatprep.subr.mxu0 0.0
        %515 = vmatpush2.msra.mxu0 0.0
        %516 = vmatprep.subr.mxu0 0.0
        %517 = vmatpush2.msra.mxu0 0.0
        %518 = vmatprep.subr.mxu0 0.0
        %519 = vmatpush2.msra.mxu0 0.0
        %520 = vmatprep.subr.mxu0 0.0
        %521 = vmatpush2.msra.mxu0 0.0
        %522 = vmatprep.subr.mxu0 0.0
        %523 = vmatpush2.msra.mxu0 0.0
        %524 = vmatprep.subr.mxu0 0.0
        %525 = vmatpush2.msra.mxu0 0.0
        %526 = vmatprep.subr.mxu0 0.0
        %527 = vmatpush2.msra.mxu0 0.0
        %528 = vmatprep.subr.mxu0 0.0
        %529 = vmatpush2.msra.mxu0 0.0
        %530 = vmatprep.subr.mxu0 0.0
        %531 = vmatpush2.msra.mxu0 0.0
        %532 = vmatprep.subr.mxu0 0.0
        %533 = vmatpush2.msra.mxu0 0.0
        %534 = vmatprep.subr.mxu0 0.0
        %535 = vmatpush2.msra.mxu0 0.0
        %536 = vmatprep.subr.mxu0 0.0
        %537 = vmatpush2.msra.mxu0 0.0
        %538 = vmatprep.subr.mxu0 0.0
        %539 = vmatpush2.msra.mxu0 0.0
        %540 = vmatprep.subr.mxu0 0.0
        %541 = vmatpush2.msra.mxu0 0.0
        %542 = vmatprep.mubr.f32.mxu0 0.0
        %543 = vmatmul.mubr.f32.gmra.mxu0 %v470
        %v544 = vpop.f32.mrf.mxu0
        %v545 = vadd.f32 %v394, %v544
        %v546 = vpop.f32.mrf.mxu0
        %v547 = vadd.f32 %v396, %v546
        %548 = vdwg.mxu0
        %549 = vmatprep.subr.mxu0 0.0
        %550 = vmatpush1.msra.mxu0 0.0
        %551 = vmatprep.subr.mxu0 0.0
        %552 = vmatpush1.msra.mxu0 0.0
        %553 = vmatprep.subr.mxu0 0.0
        %554 = vmatpush1.msra.mxu0 0.0
        %555 = vmatprep.subr.mxu0 0.0
        %556 = vmatpush1.msra.mxu0 0.0
        %557 = vmatprep.subr.mxu0 0.0
        %558 = vmatpush1.msra.mxu0 0.0
        %559 = vmatprep.subr.mxu0 0.0
        %560 = vmatpush1.msra.mxu0 0.0
        %561 = vmatprep.subr.mxu0 0.0
        %562 = vmatpush1.msra.mxu0 0.0
        %563 = vmatprep.subr.mxu0 0.0
        %564 = vmatpush1.msra.mxu0 0.0
        %565 = vmatprep.subr.mxu0 0.0
        %566 = vmatpush1.msra.mxu0 0.0
        %567 = vmatprep.subr.mxu0 0.0
        %568 = vmatpush1.msra.mxu0 0.0
        %569 = vmatprep.subr.mxu0 0.0
        %570 = vmatpush1.msra.mxu0 0.0
        %571 = vmatprep.subr.mxu0 0.0
        %572 = vmatpush1.msra.mxu0 0.0
        %573 = vmatprep.subr.mxu0 0.0
        %574 = vmatpush1.msra.mxu0 0.0
        %575 = vmatprep.subr.mxu0 0.0
        %576 = vmatpush1.msra.mxu0 0.0
        %577 = vmatprep.subr.mxu0 0.0
        %578 = vmatpush1.msra.mxu0 0.0
        %579 = vmatprep.subr.mxu0 0.0
        %580 = vmatpush1.msra.mxu0 %v476
        %581 = vmatprep.subr.mxu0 0.0
        %582 = vmatpush2.msra.mxu0 0.0
        %583 = vmatprep.subr.mxu0 0.0
        %584 = vmatpush2.msra.mxu0 0.0
        %585 = vmatprep.subr.mxu0 0.0
        %586 = vmatpush2.msra.mxu0 0.0
        %587 = vmatprep.subr.mxu0 0.0
        %588 = vmatpush2.msra.mxu0 0.0
        %589 = vmatprep.subr.mxu0 0.0
        %590 = vmatpush2.msra.mxu0 0.0
        %591 = vmatprep.subr.mxu0 0.0
        %592 = vmatpush2.msra.mxu0 0.0
        %593 = vmatprep.subr.mxu0 0.0
        %594 = vmatpush2.msra.mxu0 0.0
        %595 = vmatprep.subr.mxu0 0.0
        %596 = vmatpush2.msra.mxu0 0.0
        %597 = vmatprep.subr.mxu0 0.0
        %598 = vmatpush2.msra.mxu0 0.0
        %599 = vmatprep.subr.mxu0 0.0
        %600 = vmatpush2.msra.mxu0 0.0
        %601 = vmatprep.subr.mxu0 0.0
        %602 = vmatpush2.msra.mxu0 0.0
        %603 = vmatprep.subr.mxu0 0.0
        %604 = vmatpush2.msra.mxu0 0.0
        %605 = vmatprep.subr.mxu0 0.0
        %606 = vmatpush2.msra.mxu0 0.0
        %607 = vmatprep.subr.mxu0 0.0
        %608 = vmatpush2.msra.mxu0 0.0
        %609 = vmatprep.subr.mxu0 0.0
        %610 = vmatpush2.msra.mxu0 0.0
        %611 = vmatprep.subr.mxu0 0.0
        %612 = vmatpush2.msra.mxu0 0.0
        %613 = vmatprep.mubr.f32.mxu0 0.0
        %614 = vmatmul.mubr.f32.gmra.mxu0 %v470
        %v615 = vpop.f32.mrf.mxu0
        %v616 = vadd.f32 %v465, %v615
        %v617 = vpop.f32.mrf.mxu0
        %618 = vdwg.mxu0
        %v619 = vld [vmem:[%s182] sm:$0xff]
        %v620 = vld [vmem:[%s182 + $0x8] sm:$0xff]
        %v623 = vcombine.high %v619, %v619
        %v624 = vcombine.high %v620, %v620
        %625 = vrot.lane.b32.xlu0 %v619, 126
        %v626 = vpop.permute.xlu0 %625
        %627 = vrot.lane.b32.xlu0 %v623, 126
        %v628 = vpop.permute.xlu0 %627
        %629 = vrot.lane.b32.xlu0 %v620, 126
        %v630 = vpop.permute.xlu0 %629
        %631 = vrot.lane.b32.xlu0 %v624, 126
        %v632 = vpop.permute.xlu0 %631
        %vm633 = vcmask 1031168
        %v634 = vsel %vm633, %v626, %v628
        %v635 = vsel %vm633, %v628, %v630
        %v636 = vsel %vm633, %v630, %v632
        %v638 = vsel %vm316, %v290, 0
        %v640 = vsel %vm320, %v634, 0
        %v642 = vsel %vm320, %v635, 0
        %v644 = vsel %vm320, %v636, 0
        %646 = vmatprep.subr.mxu0 0.0
        %647 = vmatpush1.msra.mxu0 0.0
        %648 = vmatprep.subr.mxu0 0.0
        %649 = vmatpush1.msra.mxu0 0.0
        %650 = vmatprep.subr.mxu0 0.0
        %651 = vmatpush1.msra.mxu0 0.0
        %652 = vmatprep.subr.mxu0 0.0
        %653 = vmatpush1.msra.mxu0 0.0
        %654 = vmatprep.subr.mxu0 0.0
        %655 = vmatpush1.msra.mxu0 0.0
        %656 = vmatprep.subr.mxu0 0.0
        %657 = vmatpush1.msra.mxu0 0.0
        %658 = vmatprep.subr.mxu0 0.0
        %659 = vmatpush1.msra.mxu0 0.0
        %660 = vmatprep.subr.mxu0 0.0
        %661 = vmatpush1.msra.mxu0 0.0
        %662 = vmatprep.subr.mxu0 0.0
        %663 = vmatpush1.msra.mxu0 0.0
        %664 = vmatprep.subr.mxu0 0.0
        %665 = vmatpush1.msra.mxu0 0.0
        %666 = vmatprep.subr.mxu0 0.0
        %667 = vmatpush1.msra.mxu0 0.0
        %668 = vmatprep.subr.mxu0 0.0
        %669 = vmatpush1.msra.mxu0 0.0
        %670 = vmatprep.subr.mxu0 0.0
        %671 = vmatpush1.msra.mxu0 0.0
        %672 = vmatprep.subr.mxu0 0.0
        %673 = vmatpush1.msra.mxu0 0.0
        %674 = vmatprep.subr.mxu0 0.0
        %675 = vmatpush1.msra.mxu0 0.0
        %676 = vmatprep.subr.mxu0 %v642
        %677 = vmatpush1.msra.mxu0 %v640
        %678 = vmatprep.subr.mxu0 0.0
        %679 = vmatpush2.msra.mxu0 0.0
        %680 = vmatprep.subr.mxu0 0.0
        %681 = vmatpush2.msra.mxu0 0.0
        %682 = vmatprep.subr.mxu0 0.0
        %683 = vmatpush2.msra.mxu0 0.0
        %684 = vmatprep.subr.mxu0 0.0
        %685 = vmatpush2.msra.mxu0 0.0
        %686 = vmatprep.subr.mxu0 0.0
        %687 = vmatpush2.msra.mxu0 0.0
        %688 = vmatprep.subr.mxu0 0.0
        %689 = vmatpush2.msra.mxu0 0.0
        %690 = vmatprep.subr.mxu0 0.0
        %691 = vmatpush2.msra.mxu0 0.0
        %692 = vmatprep.subr.mxu0 0.0
        %693 = vmatpush2.msra.mxu0 0.0
        %694 = vmatprep.subr.mxu0 0.0
        %695 = vmatpush2.msra.mxu0 0.0
        %696 = vmatprep.subr.mxu0 0.0
        %697 = vmatpush2.msra.mxu0 0.0
        %698 = vmatprep.subr.mxu0 0.0
        %699 = vmatpush2.msra.mxu0 0.0
        %700 = vmatprep.subr.mxu0 0.0
        %701 = vmatpush2.msra.mxu0 0.0
        %702 = vmatprep.subr.mxu0 0.0
        %703 = vmatpush2.msra.mxu0 0.0
        %704 = vmatprep.subr.mxu0 0.0
        %705 = vmatpush2.msra.mxu0 0.0
        %706 = vmatprep.subr.mxu0 0.0
        %707 = vmatpush2.msra.mxu0 0.0
        %708 = vmatprep.subr.mxu0 0.0
        %709 = vmatpush2.msra.mxu0 0.0
        %710 = vmatprep.mubr.f32.mxu0 0.0
        %711 = vmatmul.mubr.f32.gmra.mxu0 %v638
        %v712 = vpop.f32.mrf.mxu0
        %v713 = vadd.f32 0.0, %v712
        %v714 = vpop.f32.mrf.mxu0
        %v715 = vadd.f32 0.0, %v714
        %716 = vdwg.mxu0
        %717 = vmatprep.subr.mxu0 0.0
        %718 = vmatpush1.msra.mxu0 0.0
        %719 = vmatprep.subr.mxu0 0.0
        %720 = vmatpush1.msra.mxu0 0.0
        %721 = vmatprep.subr.mxu0 0.0
        %722 = vmatpush1.msra.mxu0 0.0
        %723 = vmatprep.subr.mxu0 0.0
        %724 = vmatpush1.msra.mxu0 0.0
        %725 = vmatprep.subr.mxu0 0.0
        %726 = vmatpush1.msra.mxu0 0.0
        %727 = vmatprep.subr.mxu0 0.0
        %728 = vmatpush1.msra.mxu0 0.0
        %729 = vmatprep.subr.mxu0 0.0
        %730 = vmatpush1.msra.mxu0 0.0
        %731 = vmatprep.subr.mxu0 0.0
        %732 = vmatpush1.msra.mxu0 0.0
        %733 = vmatprep.subr.mxu0 0.0
        %734 = vmatpush1.msra.mxu0 0.0
        %735 = vmatprep.subr.mxu0 0.0
        %736 = vmatpush1.msra.mxu0 0.0
        %737 = vmatprep.subr.mxu0 0.0
        %738 = vmatpush1.msra.mxu0 0.0
        %739 = vmatprep.subr.mxu0 0.0
        %740 = vmatpush1.msra.mxu0 0.0
        %741 = vmatprep.subr.mxu0 0.0
        %742 = vmatpush1.msra.mxu0 0.0
        %743 = vmatprep.subr.mxu0 0.0
        %744 = vmatpush1.msra.mxu0 0.0
        %745 = vmatprep.subr.mxu0 0.0
        %746 = vmatpush1.msra.mxu0 0.0
        %747 = vmatprep.subr.mxu0 0.0
        %748 = vmatpush1.msra.mxu0 %v644
        %749 = vmatprep.subr.mxu0 0.0
        %750 = vmatpush2.msra.mxu0 0.0
        %751 = vmatprep.subr.mxu0 0.0
        %752 = vmatpush2.msra.mxu0 0.0
        %753 = vmatprep.subr.mxu0 0.0
        %754 = vmatpush2.msra.mxu0 0.0
        %755 = vmatprep.subr.mxu0 0.0
        %756 = vmatpush2.msra.mxu0 0.0
        %757 = vmatprep.subr.mxu0 0.0
        %758 = vmatpush2.msra.mxu0 0.0
        %759 = vmatprep.subr.mxu0 0.0
        %760 = vmatpush2.msra.mxu0 0.0
        %761 = vmatprep.subr.mxu0 0.0
        %762 = vmatpush2.msra.mxu0 0.0
        %763 = vmatprep.subr.mxu0 0.0
        %764 = vmatpush2.msra.mxu0 0.0
        %765 = vmatprep.subr.mxu0 0.0
        %766 = vmatpush2.msra.mxu0 0.0
        %767 = vmatprep.subr.mxu0 0.0
        %768 = vmatpush2.msra.mxu0 0.0
        %769 = vmatprep.subr.mxu0 0.0
        %770 = vmatpush2.msra.mxu0 0.0
        %771 = vmatprep.subr.mxu0 0.0
        %772 = vmatpush2.msra.mxu0 0.0
        %773 = vmatprep.subr.mxu0 0.0
        %774 = vmatpush2.msra.mxu0 0.0
        %775 = vmatprep.subr.mxu0 0.0
        %776 = vmatpush2.msra.mxu0 0.0
        %777 = vmatprep.subr.mxu0 0.0
        %778 = vmatpush2.msra.mxu0 0.0
        %779 = vmatprep.subr.mxu0 0.0
        %780 = vmatpush2.msra.mxu0 0.0
        %781 = vmatprep.mubr.f32.mxu0 0.0
        %782 = vmatmul.mubr.f32.gmra.mxu0 %v638
        %v783 = vpop.f32.mrf.mxu0
        %v784 = vadd.f32 0.0, %v783
        %v785 = vpop.f32.mrf.mxu0
        %786 = vdwg.mxu0
        %v787 = vadd.f32 %v545, %v713
        %v788 = vadd.f32 %v547, %v715
        %v789 = vadd.f32 %v616, %v784
        %v790 = vld [vmem:[%s182] sm:$0xff]
        %v791 = vld [vmem:[%s182 + $0x8] sm:$0xff]
        %v794 = vcombine.high %v790, %v790
        %v795 = vcombine.high %v791, %v791
        %796 = vrot.lane.b32.xlu0 %v790, 110
        %v797 = vpop.permute.xlu0 %796
        %798 = vrot.lane.b32.xlu0 %v794, 110
        %v799 = vpop.permute.xlu0 %798
        %800 = vrot.lane.b32.xlu0 %v791, 110
        %v801 = vpop.permute.xlu0 %800
        %802 = vrot.lane.b32.xlu0 %v795, 110
        %v803 = vpop.permute.xlu0 %802
        %vm804 = vcmask 900096
        %v805 = vsel %vm804, %v797, %v799
        %v806 = vsel %vm804, %v799, %v801
        %v807 = vsel %vm804, %v801, %v803
        %v809 = vsel %vm316, %v291, 0
        %v811 = vsel %vm320, %v805, 0
        %v813 = vsel %vm320, %v806, 0
        %v815 = vsel %vm320, %v807, 0
        %817 = vmatprep.subr.mxu0 0.0
        %818 = vmatpush1.msra.mxu0 0.0
        %819 = vmatprep.subr.mxu0 0.0
        %820 = vmatpush1.msra.mxu0 0.0
        %821 = vmatprep.subr.mxu0 0.0
        %822 = vmatpush1.msra.mxu0 0.0
        %823 = vmatprep.subr.mxu0 0.0
        %824 = vmatpush1.msra.mxu0 0.0
        %825 = vmatprep.subr.mxu0 0.0
        %826 = vmatpush1.msra.mxu0 0.0
        %827 = vmatprep.subr.mxu0 0.0
        %828 = vmatpush1.msra.mxu0 0.0
        %829 = vmatprep.subr.mxu0 0.0
        %830 = vmatpush1.msra.mxu0 0.0
        %831 = vmatprep.subr.mxu0 0.0
        %832 = vmatpush1.msra.mxu0 0.0
        %833 = vmatprep.subr.mxu0 0.0
        %834 = vmatpush1.msra.mxu0 0.0
        %835 = vmatprep.subr.mxu0 0.0
        %836 = vmatpush1.msra.mxu0 0.0
        %837 = vmatprep.subr.mxu0 0.0
        %838 = vmatpush1.msra.mxu0 0.0
        %839 = vmatprep.subr.mxu0 0.0
        %840 = vmatpush1.msra.mxu0 0.0
        %841 = vmatprep.subr.mxu0 0.0
        %842 = vmatpush1.msra.mxu0 0.0
        %843 = vmatprep.subr.mxu0 0.0
        %844 = vmatpush1.msra.mxu0 0.0
        %845 = vmatprep.subr.mxu0 0.0
        %846 = vmatpush1.msra.mxu0 0.0
        %847 = vmatprep.subr.mxu0 %v813
        %848 = vmatpush1.msra.mxu0 %v811
        %849 = vmatprep.subr.mxu0 0.0
        %850 = vmatpush2.msra.mxu0 0.0
        %851 = vmatprep.subr.mxu0 0.0
        %852 = vmatpush2.msra.mxu0 0.0
        %853 = vmatprep.subr.mxu0 0.0
        %854 = vmatpush2.msra.mxu0 0.0
        %855 = vmatprep.subr.mxu0 0.0
        %856 = vmatpush2.msra.mxu0 0.0
        %857 = vmatprep.subr.mxu0 0.0
        %858 = vmatpush2.msra.mxu0 0.0
        %859 = vmatprep.subr.mxu0 0.0
        %860 = vmatpush2.msra.mxu0 0.0
        %861 = vmatprep.subr.mxu0 0.0
        %862 = vmatpush2.msra.mxu0 0.0
        %863 = vmatprep.subr.mxu0 0.0
        %864 = vmatpush2.msra.mxu0 0.0
        %865 = vmatprep.subr.mxu0 0.0
        %866 = vmatpush2.msra.mxu0 0.0
        %867 = vmatprep.subr.mxu0 0.0
        %868 = vmatpush2.msra.mxu0 0.0
        %869 = vmatprep.subr.mxu0 0.0
        %870 = vmatpush2.msra.mxu0 0.0
        %871 = vmatprep.subr.mxu0 0.0
        %872 = vmatpush2.msra.mxu0 0.0
        %873 = vmatprep.subr.mxu0 0.0
        %874 = vmatpush2.msra.mxu0 0.0
        %875 = vmatprep.subr.mxu0 0.0
        %876 = vmatpush2.msra.mxu0 0.0
        %877 = vmatprep.subr.mxu0 0.0
        %878 = vmatpush2.msra.mxu0 0.0
        %879 = vmatprep.subr.mxu0 0.0
        %880 = vmatpush2.msra.mxu0 0.0
        %881 = vmatprep.mubr.f32.mxu0 0.0
        %882 = vmatmul.mubr.f32.gmra.mxu0 %v809
        %v883 = vpop.f32.mrf.mxu0
        %v884 = vadd.f32 0.0, %v883
        %v885 = vpop.f32.mrf.mxu0
        %v886 = vadd.f32 0.0, %v885
        %887 = vdwg.mxu0
        %888 = vmatprep.subr.mxu0 0.0
        %889 = vmatpush1.msra.mxu0 0.0
        %890 = vmatprep.subr.mxu0 0.0
        %891 = vmatpush1.msra.mxu0 0.0
        %892 = vmatprep.subr.mxu0 0.0
        %893 = vmatpush1.msra.mxu0 0.0
        %894 = vmatprep.subr.mxu0 0.0
        %895 = vmatpush1.msra.mxu0 0.0
        %896 = vmatprep.subr.mxu0 0.0
        %897 = vmatpush1.msra.mxu0 0.0
        %898 = vmatprep.subr.mxu0 0.0
        %899 = vmatpush1.msra.mxu0 0.0
        %900 = vmatprep.subr.mxu0 0.0
        %901 = vmatpush1.msra.mxu0 0.0
        %902 = vmatprep.subr.mxu0 0.0
        %903 = vmatpush1.msra.mxu0 0.0
        %904 = vmatprep.subr.mxu0 0.0
        %905 = vmatpush1.msra.mxu0 0.0
        %906 = vmatprep.subr.mxu0 0.0
        %907 = vmatpush1.msra.mxu0 0.0
        %908 = vmatprep.subr.mxu0 0.0
        %909 = vmatpush1.msra.mxu0 0.0
        %910 = vmatprep.subr.mxu0 0.0
        %911 = vmatpush1.msra.mxu0 0.0
        %912 = vmatprep.subr.mxu0 0.0
        %913 = vmatpush1.msra.mxu0 0.0
        %914 = vmatprep.subr.mxu0 0.0
        %915 = vmatpush1.msra.mxu0 0.0
        %916 = vmatprep.subr.mxu0 0.0
        %917 = vmatpush1.msra.mxu0 0.0
        %918 = vmatprep.subr.mxu0 0.0
        %919 = vmatpush1.msra.mxu0 %v815
        %920 = vmatprep.subr.mxu0 0.0
        %921 = vmatpush2.msra.mxu0 0.0
        %922 = vmatprep.subr.mxu0 0.0
        %923 = vmatpush2.msra.mxu0 0.0
        %924 = vmatprep.subr.mxu0 0.0
        %925 = vmatpush2.msra.mxu0 0.0
        %926 = vmatprep.subr.mxu0 0.0
        %927 = vmatpush2.msra.mxu0 0.0
        %928 = vmatprep.subr.mxu0 0.0
        %929 = vmatpush2.msra.mxu0 0.0
        %930 = vmatprep.subr.mxu0 0.0
        %931 = vmatpush2.msra.mxu0 0.0
        %932 = vmatprep.subr.mxu0 0.0
        %933 = vmatpush2.msra.mxu0 0.0
        %934 = vmatprep.subr.mxu0 0.0
        %935 = vmatpush2.msra.mxu0 0.0
        %936 = vmatprep.subr.mxu0 0.0
        %937 = vmatpush2.msra.mxu0 0.0
        %938 = vmatprep.subr.mxu0 0.0
        %939 = vmatpush2.msra.mxu0 0.0
        %940 = vmatprep.subr.mxu0 0.0
        %941 = vmatpush2.msra.mxu0 0.0
        %942 = vmatprep.subr.mxu0 0.0
        %943 = vmatpush2.msra.mxu0 0.0
        %944 = vmatprep.subr.mxu0 0.0
        %945 = vmatpush2.msra.mxu0 0.0
        %946 = vmatprep.subr.mxu0 0.0
        %947 = vmatpush2.msra.mxu0 0.0
        %948 = vmatprep.subr.mxu0 0.0
        %949 = vmatpush2.msra.mxu0 0.0
        %950 = vmatprep.subr.mxu0 0.0
        %951 = vmatpush2.msra.mxu0 0.0
        %952 = vmatprep.mubr.f32.mxu0 0.0
        %953 = vmatmul.mubr.f32.gmra.mxu0 %v809
        %v954 = vpop.f32.mrf.mxu0
        %v955 = vadd.f32 0.0, %v954
        %v956 = vpop.f32.mrf.mxu0
        %957 = vdwg.mxu0
        %v958 = vadd.f32 %v787, %v884
        %v959 = vadd.f32 %v788, %v886
        %v960 = vadd.f32 %v789, %v955
        %v961 = vld [vmem:[%s182] sm:$0xff]
        %v962 = vld [vmem:[%s182 + $0x8] sm:$0xff]
        %v965 = vcombine.high %v961, %v961
        %v966 = vcombine.high %v962, %v962
        %967 = vrot.lane.b32.xlu0 %v961, 109
        %v968 = vpop.permute.xlu0 %967
        %969 = vrot.lane.b32.xlu0 %v965, 109
        %v970 = vpop.permute.xlu0 %969
        %971 = vrot.lane.b32.xlu0 %v962, 109
        %v972 = vpop.permute.xlu0 %971
        %973 = vrot.lane.b32.xlu0 %v966, 109
        %v974 = vpop.permute.xlu0 %973
        %vm975 = vcmask 891904
        %v976 = vsel %vm975, %v968, %v970
        %v977 = vsel %vm975, %v970, %v972
        %v978 = vsel %vm975, %v972, %v974
        %v980 = vsel %vm316, %v292, 0
        %v982 = vsel %vm320, %v976, 0
        %v984 = vsel %vm320, %v977, 0
        %v986 = vsel %vm320, %v978, 0
        %988 = vmatprep.subr.mxu0 0.0
        %989 = vmatpush1.msra.mxu0 0.0
        %990 = vmatprep.subr.mxu0 0.0
        %991 = vmatpush1.msra.mxu0 0.0
        %992 = vmatprep.subr.mxu0 0.0
        %993 = vmatpush1.msra.mxu0 0.0
        %994 = vmatprep.subr.mxu0 0.0
        %995 = vmatpush1.msra.mxu0 0.0
        %996 = vmatprep.subr.mxu0 0.0
        %997 = vmatpush1.msra.mxu0 0.0
        %998 = vmatprep.subr.mxu0 0.0
        %999 = vmatpush1.msra.mxu0 0.0
        %1000 = vmatprep.subr.mxu0 0.0
        %1001 = vmatpush1.msra.mxu0 0.0
        %1002 = vmatprep.subr.mxu0 0.0
        %1003 = vmatpush1.msra.mxu0 0.0
        %1004 = vmatprep.subr.mxu0 0.0
        %1005 = vmatpush1.msra.mxu0 0.0
        %1006 = vmatprep.subr.mxu0 0.0
        %1007 = vmatpush1.msra.mxu0 0.0
        %1008 = vmatprep.subr.mxu0 0.0
        %1009 = vmatpush1.msra.mxu0 0.0
        %1010 = vmatprep.subr.mxu0 0.0
        %1011 = vmatpush1.msra.mxu0 0.0
        %1012 = vmatprep.subr.mxu0 0.0
        %1013 = vmatpush1.msra.mxu0 0.0
        %1014 = vmatprep.subr.mxu0 0.0
        %1015 = vmatpush1.msra.mxu0 0.0
        %1016 = vmatprep.subr.mxu0 0.0
        %1017 = vmatpush1.msra.mxu0 0.0
        %1018 = vmatprep.subr.mxu0 %v984
        %1019 = vmatpush1.msra.mxu0 %v982
        %1020 = vmatprep.subr.mxu0 0.0
        %1021 = vmatpush2.msra.mxu0 0.0
        %1022 = vmatprep.subr.mxu0 0.0
        %1023 = vmatpush2.msra.mxu0 0.0
        %1024 = vmatprep.subr.mxu0 0.0
        %1025 = vmatpush2.msra.mxu0 0.0
        %1026 = vmatprep.subr.mxu0 0.0
        %1027 = vmatpush2.msra.mxu0 0.0
        %1028 = vmatprep.subr.mxu0 0.0
        %1029 = vmatpush2.msra.mxu0 0.0
        %1030 = vmatprep.subr.mxu0 0.0
        %1031 = vmatpush2.msra.mxu0 0.0
        %1032 = vmatprep.subr.mxu0 0.0
        %1033 = vmatpush2.msra.mxu0 0.0
        %1034 = vmatprep.subr.mxu0 0.0
        %1035 = vmatpush2.msra.mxu0 0.0
        %1036 = vmatprep.subr.mxu0 0.0
        %1037 = vmatpush2.msra.mxu0 0.0
        %1038 = vmatprep.subr.mxu0 0.0
        %1039 = vmatpush2.msra.mxu0 0.0
        %1040 = vmatprep.subr.mxu0 0.0
        %1041 = vmatpush2.msra.mxu0 0.0
        %1042 = vmatprep.subr.mxu0 0.0
        %1043 = vmatpush2.msra.mxu0 0.0
        %1044 = vmatprep.subr.mxu0 0.0
        %1045 = vmatpush2.msra.mxu0 0.0
        %1046 = vmatprep.subr.mxu0 0.0
        %1047 = vmatpush2.msra.mxu0 0.0
        %1048 = vmatprep.subr.mxu0 0.0
        %1049 = vmatpush2.msra.mxu0 0.0
        %1050 = vmatprep.subr.mxu0 0.0
        %1051 = vmatpush2.msra.mxu0 0.0
        %1052 = vmatprep.mubr.f32.mxu0 0.0
        %1053 = vmatmul.mubr.f32.gmra.mxu0 %v980
        %v1054 = vpop.f32.mrf.mxu0
        %v1055 = vadd.f32 0.0, %v1054
        %v1056 = vpop.f32.mrf.mxu0
        %v1057 = vadd.f32 0.0, %v1056
        %1058 = vdwg.mxu0
        %1059 = vmatprep.subr.mxu0 0.0
        %1060 = vmatpush1.msra.mxu0 0.0
        %1061 = vmatprep.subr.mxu0 0.0
        %1062 = vmatpush1.msra.mxu0 0.0
        %1063 = vmatprep.subr.mxu0 0.0
        %1064 = vmatpush1.msra.mxu0 0.0
        %1065 = vmatprep.subr.mxu0 0.0
        %1066 = vmatpush1.msra.mxu0 0.0
        %1067 = vmatprep.subr.mxu0 0.0
        %1068 = vmatpush1.msra.mxu0 0.0
        %1069 = vmatprep.subr.mxu0 0.0
        %1070 = vmatpush1.msra.mxu0 0.0
        %1071 = vmatprep.subr.mxu0 0.0
        %1072 = vmatpush1.msra.mxu0 0.0
        %1073 = vmatprep.subr.mxu0 0.0
        %1074 = vmatpush1.msra.mxu0 0.0
        %1075 = vmatprep.subr.mxu0 0.0
        %1076 = vmatpush1.msra.mxu0 0.0
        %1077 = vmatprep.subr.mxu0 0.0
        %1078 = vmatpush1.msra.mxu0 0.0
        %1079 = vmatprep.subr.mxu0 0.0
        %1080 = vmatpush1.msra.mxu0 0.0
        %1081 = vmatprep.subr.mxu0 0.0
        %1082 = vmatpush1.msra.mxu0 0.0
        %1083 = vmatprep.subr.mxu0 0.0
        %1084 = vmatpush1.msra.mxu0 0.0
        %1085 = vmatprep.subr.mxu0 0.0
        %1086 = vmatpush1.msra.mxu0 0.0
        %1087 = vmatprep.subr.mxu0 0.0
        %1088 = vmatpush1.msra.mxu0 0.0
        %1089 = vmatprep.subr.mxu0 0.0
        %1090 = vmatpush1.msra.mxu0 %v986
        %1091 = vmatprep.subr.mxu0 0.0
        %1092 = vmatpush2.msra.mxu0 0.0
        %1093 = vmatprep.subr.mxu0 0.0
        %1094 = vmatpush2.msra.mxu0 0.0
        %1095 = vmatprep.subr.mxu0 0.0
        %1096 = vmatpush2.msra.mxu0 0.0
        %1097 = vmatprep.subr.mxu0 0.0
        %1098 = vmatpush2.msra.mxu0 0.0
        %1099 = vmatprep.subr.mxu0 0.0
        %1100 = vmatpush2.msra.mxu0 0.0
        %1101 = vmatprep.subr.mxu0 0.0
        %1102 = vmatpush2.msra.mxu0 0.0
        %1103 = vmatprep.subr.mxu0 0.0
        %1104 = vmatpush2.msra.mxu0 0.0
        %1105 = vmatprep.subr.mxu0 0.0
        %1106 = vmatpush2.msra.mxu0 0.0
        %1107 = vmatprep.subr.mxu0 0.0
        %1108 = vmatpush2.msra.mxu0 0.0
        %1109 = vmatprep.subr.mxu0 0.0
        %1110 = vmatpush2.msra.mxu0 0.0
        %1111 = vmatprep.subr.mxu0 0.0
        %1112 = vmatpush2.msra.mxu0 0.0
        %1113 = vmatprep.subr.mxu0 0.0
        %1114 = vmatpush2.msra.mxu0 0.0
        %1115 = vmatprep.subr.mxu0 0.0
        %1116 = vmatpush2.msra.mxu0 0.0
        %1117 = vmatprep.subr.mxu0 0.0
        %1118 = vmatpush2.msra.mxu0 0.0
        %1119 = vmatprep.subr.mxu0 0.0
        %1120 = vmatpush2.msra.mxu0 0.0
        %1121 = vmatprep.subr.mxu0 0.0
        %1122 = vmatpush2.msra.mxu0 0.0
        %1123 = vmatprep.mubr.f32.mxu0 0.0
        %1124 = vmatmul.mubr.f32.gmra.mxu0 %v980
        %v1125 = vpop.f32.mrf.mxu0
        %v1126 = vadd.f32 0.0, %v1125
        %v1127 = vpop.f32.mrf.mxu0
        %1128 = vdwg.mxu0
        %v1129 = vadd.f32 %v958, %v1055
        %v1130 = vadd.f32 %v959, %v1057
        %v1131 = vadd.f32 %v960, %v1126
        %v1132 = vld [vmem:[%s182] sm:$0xff]
        %v1133 = vld [vmem:[%s182 + $0x8] sm:$0xff]
        %v1136 = vcombine.high %v1132, %v1132
        %v1137 = vcombine.high %v1133, %v1133
        %1138 = vrot.lane.b32.xlu0 %v1132, 108
        %v1139 = vpop.permute.xlu0 %1138
        %1140 = vrot.lane.b32.xlu0 %v1136, 108
        %v1141 = vpop.permute.xlu0 %1140
        %1142 = vrot.lane.b32.xlu0 %v1133, 108
        %v1143 = vpop.permute.xlu0 %1142
        %1144 = vrot.lane.b32.xlu0 %v1137, 108
        %v1145 = vpop.permute.xlu0 %1144
        %vm1146 = vcmask 883712
        %v1147 = vsel %vm1146, %v1139, %v1141
        %v1148 = vsel %vm1146, %v1141, %v1143
        %v1149 = vsel %vm1146, %v1143, %v1145
        %v1151 = vsel %vm316, %v293, 0
        %v1153 = vsel %vm320, %v1147, 0
        %v1155 = vsel %vm320, %v1148, 0
        %v1157 = vsel %vm320, %v1149, 0
        %1159 = vmatprep.subr.mxu0 0.0
        %1160 = vmatpush1.msra.mxu0 0.0
        %1161 = vmatprep.subr.mxu0 0.0
        %1162 = vmatpush1.msra.mxu0 0.0
        %1163 = vmatprep.subr.mxu0 0.0
        %1164 = vmatpush1.msra.mxu0 0.0
        %1165 = vmatprep.subr.mxu0 0.0
        %1166 = vmatpush1.msra.mxu0 0.0
        %1167 = vmatprep.subr.mxu0 0.0
        %1168 = vmatpush1.msra.mxu0 0.0
        %1169 = vmatprep.subr.mxu0 0.0
        %1170 = vmatpush1.msra.mxu0 0.0
        %1171 = vmatprep.subr.mxu0 0.0
        %1172 = vmatpush1.msra.mxu0 0.0
        %1173 = vmatprep.subr.mxu0 0.0
        %1174 = vmatpush1.msra.mxu0 0.0
        %1175 = vmatprep.subr.mxu0 0.0
        %1176 = vmatpush1.msra.mxu0 0.0
        %1177 = vmatprep.subr.mxu0 0.0
        %1178 = vmatpush1.msra.mxu0 0.0
        %1179 = vmatprep.subr.mxu0 0.0
        %1180 = vmatpush1.msra.mxu0 0.0
        %1181 = vmatprep.subr.mxu0 0.0
        %1182 = vmatpush1.msra.mxu0 0.0
        %1183 = vmatprep.subr.mxu0 0.0
        %1184 = vmatpush1.msra.mxu0 0.0
        %1185 = vmatprep.subr.mxu0 0.0
        %1186 = vmatpush1.msra.mxu0 0.0
        %1187 = vmatprep.subr.mxu0 0.0
        %1188 = vmatpush1.msra.mxu0 0.0
        %1189 = vmatprep.subr.mxu0 %v1155
        %1190 = vmatpush1.msra.mxu0 %v1153
        %1191 = vmatprep.subr.mxu0 0.0
        %1192 = vmatpush2.msra.mxu0 0.0
        %1193 = vmatprep.subr.mxu0 0.0
        %1194 = vmatpush2.msra.mxu0 0.0
        %1195 = vmatprep.subr.mxu0 0.0
        %1196 = vmatpush2.msra.mxu0 0.0
        %1197 = vmatprep.subr.mxu0 0.0
        %1198 = vmatpush2.msra.mxu0 0.0
        %1199 = vmatprep.subr.mxu0 0.0
        %1200 = vmatpush2.msra.mxu0 0.0
        %1201 = vmatprep.subr.mxu0 0.0
        %1202 = vmatpush2.msra.mxu0 0.0
        %1203 = vmatprep.subr.mxu0 0.0
        %1204 = vmatpush2.msra.mxu0 0.0
        %1205 = vmatprep.subr.mxu0 0.0
        %1206 = vmatpush2.msra.mxu0 0.0
        %1207 = vmatprep.subr.mxu0 0.0
        %1208 = vmatpush2.msra.mxu0 0.0
        %1209 = vmatprep.subr.mxu0 0.0
        %1210 = vmatpush2.msra.mxu0 0.0
        %1211 = vmatprep.subr.mxu0 0.0
        %1212 = vmatpush2.msra.mxu0 0.0
        %1213 = vmatprep.subr.mxu0 0.0
        %1214 = vmatpush2.msra.mxu0 0.0
        %1215 = vmatprep.subr.mxu0 0.0
        %1216 = vmatpush2.msra.mxu0 0.0
        %1217 = vmatprep.subr.mxu0 0.0
        %1218 = vmatpush2.msra.mxu0 0.0
        %1219 = vmatprep.subr.mxu0 0.0
        %1220 = vmatpush2.msra.mxu0 0.0
        %1221 = vmatprep.subr.mxu0 0.0
        %1222 = vmatpush2.msra.mxu0 0.0
        %1223 = vmatprep.mubr.f32.mxu0 0.0
        %1224 = vmatmul.mubr.f32.gmra.mxu0 %v1151
        %v1225 = vpop.f32.mrf.mxu0
        %v1226 = vadd.f32 0.0, %v1225
        %v1227 = vpop.f32.mrf.mxu0
        %v1228 = vadd.f32 0.0, %v1227
        %1229 = vdwg.mxu0
        %1230 = vmatprep.subr.mxu0 0.0
        %1231 = vmatpush1.msra.mxu0 0.0
        %1232 = vmatprep.subr.mxu0 0.0
        %1233 = vmatpush1.msra.mxu0 0.0
        %1234 = vmatprep.subr.mxu0 0.0
        %1235 = vmatpush1.msra.mxu0 0.0
        %1236 = vmatprep.subr.mxu0 0.0
        %1237 = vmatpush1.msra.mxu0 0.0
        %1238 = vmatprep.subr.mxu0 0.0
        %1239 = vmatpush1.msra.mxu0 0.0
        %1240 = vmatprep.subr.mxu0 0.0
        %1241 = vmatpush1.msra.mxu0 0.0
        %1242 = vmatprep.subr.mxu0 0.0
        %1243 = vmatpush1.msra.mxu0 0.0
        %1244 = vmatprep.subr.mxu0 0.0
        %1245 = vmatpush1.msra.mxu0 0.0
        %1246 = vmatprep.subr.mxu0 0.0
        %1247 = vmatpush1.msra.mxu0 0.0
        %1248 = vmatprep.subr.mxu0 0.0
        %1249 = vmatpush1.msra.mxu0 0.0
        %1250 = vmatprep.subr.mxu0 0.0
        %1251 = vmatpush1.msra.mxu0 0.0
        %1252 = vmatprep.subr.mxu0 0.0
        %1253 = vmatpush1.msra.mxu0 0.0
        %1254 = vmatprep.subr.mxu0 0.0
        %1255 = vmatpush1.msra.mxu0 0.0
        %1256 = vmatprep.subr.mxu0 0.0
        %1257 = vmatpush1.msra.mxu0 0.0
        %1258 = vmatprep.subr.mxu0 0.0
        %1259 = vmatpush1.msra.mxu0 0.0
        %1260 = vmatprep.subr.mxu0 0.0
        %1261 = vmatpush1.msra.mxu0 %v1157
        %1262 = vmatprep.subr.mxu0 0.0
        %1263 = vmatpush2.msra.mxu0 0.0
        %1264 = vmatprep.subr.mxu0 0.0
        %1265 = vmatpush2.msra.mxu0 0.0
        %1266 = vmatprep.subr.mxu0 0.0
        %1267 = vmatpush2.msra.mxu0 0.0
        %1268 = vmatprep.subr.mxu0 0.0
        %1269 = vmatpush2.msra.mxu0 0.0
        %1270 = vmatprep.subr.mxu0 0.0
        %1271 = vmatpush2.msra.mxu0 0.0
        %1272 = vmatprep.subr.mxu0 0.0
        %1273 = vmatpush2.msra.mxu0 0.0
        %1274 = vmatprep.subr.mxu0 0.0
        %1275 = vmatpush2.msra.mxu0 0.0
        %1276 = vmatprep.subr.mxu0 0.0
        %1277 = vmatpush2.msra.mxu0 0.0
        %1278 = vmatprep.subr.mxu0 0.0
        %1279 = vmatpush2.msra.mxu0 0.0
        %1280 = vmatprep.subr.mxu0 0.0
        %1281 = vmatpush2.msra.mxu0 0.0
        %1282 = vmatprep.subr.mxu0 0.0
        %1283 = vmatpush2.msra.mxu0 0.0
        %1284 = vmatprep.subr.mxu0 0.0
        %1285 = vmatpush2.msra.mxu0 0.0
        %1286 = vmatprep.subr.mxu0 0.0
        %1287 = vmatpush2.msra.mxu0 0.0
        %1288 = vmatprep.subr.mxu0 0.0
        %1289 = vmatpush2.msra.mxu0 0.0
        %1290 = vmatprep.subr.mxu0 0.0
        %1291 = vmatpush2.msra.mxu0 0.0
        %1292 = vmatprep.subr.mxu0 0.0
        %1293 = vmatpush2.msra.mxu0 0.0
        %1294 = vmatprep.mubr.f32.mxu0 0.0
        %1295 = vmatmul.mubr.f32.gmra.mxu0 %v1151
        %v1296 = vpop.f32.mrf.mxu0
        %v1297 = vadd.f32 0.0, %v1296
        %v1298 = vpop.f32.mrf.mxu0
        %1299 = vdwg.mxu0
        %v1300 = vadd.f32 %v1129, %v1226
        %v1301 = vadd.f32 %v1130, %v1228
        %v1302 = vadd.f32 %v1131, %v1297
        %v1303 = vld [vmem:[%s182] sm:$0xff]
        %v1304 = vld [vmem:[%s182 + $0x8] sm:$0xff]
        %v1307 = vcombine.high %v1303, %v1303
        %v1308 = vcombine.high %v1304, %v1304
        %1309 = vrot.lane.b32.xlu0 %v1303, 92
        %v1310 = vpop.permute.xlu0 %1309
        %1311 = vrot.lane.b32.xlu0 %v1307, 92
        %v1312 = vpop.permute.xlu0 %1311
        %1313 = vrot.lane.b32.xlu0 %v1304, 92
        %v1314 = vpop.permute.xlu0 %1313
        %1315 = vrot.lane.b32.xlu0 %v1308, 92
        %v1316 = vpop.permute.xlu0 %1315
        %vm1317 = vcmask 752640
        %v1318 = vsel %vm1317, %v1310, %v1312
        %v1319 = vsel %vm1317, %v1312, %v1314
        %v1320 = vsel %vm1317, %v1314, %v1316
        %v1322 = vsel %vm316, %v294, 0
        %v1324 = vsel %vm320, %v1318, 0
        %v1326 = vsel %vm320, %v1319, 0
        %v1328 = vsel %vm320, %v1320, 0
        %1330 = vmatprep.subr.mxu0 0.0
        %1331 = vmatpush1.msra.mxu0 0.0
        %1332 = vmatprep.subr.mxu0 0.0
        %1333 = vmatpush1.msra.mxu0 0.0
        %1334 = vmatprep.subr.mxu0 0.0
        %1335 = vmatpush1.msra.mxu0 0.0
        %1336 = vmatprep.subr.mxu0 0.0
        %1337 = vmatpush1.msra.mxu0 0.0
        %1338 = vmatprep.subr.mxu0 0.0
        %1339 = vmatpush1.msra.mxu0 0.0
        %1340 = vmatprep.subr.mxu0 0.0
        %1341 = vmatpush1.msra.mxu0 0.0
        %1342 = vmatprep.subr.mxu0 0.0
        %1343 = vmatpush1.msra.mxu0 0.0
        %1344 = vmatprep.subr.mxu0 0.0
        %1345 = vmatpush1.msra.mxu0 0.0
        %1346 = vmatprep.subr.mxu0 0.0
        %1347 = vmatpush1.msra.mxu0 0.0
        %1348 = vmatprep.subr.mxu0 0.0
        %1349 = vmatpush1.msra.mxu0 0.0
        %1350 = vmatprep.subr.mxu0 0.0
        %1351 = vmatpush1.msra.mxu0 0.0
        %1352 = vmatprep.subr.mxu0 0.0
        %1353 = vmatpush1.msra.mxu0 0.0
        %1354 = vmatprep.subr.mxu0 0.0
        %1355 = vmatpush1.msra.mxu0 0.0
        %1356 = vmatprep.subr.mxu0 0.0
        %1357 = vmatpush1.msra.mxu0 0.0
        %1358 = vmatprep.subr.mxu0 0.0
        %1359 = vmatpush1.msra.mxu0 0.0
        %1360 = vmatprep.subr.mxu0 %v1326
        %1361 = vmatpush1.msra.mxu0 %v1324
        %1362 = vmatprep.subr.mxu0 0.0
        %1363 = vmatpush2.msra.mxu0 0.0
        %1364 = vmatprep.subr.mxu0 0.0
        %1365 = vmatpush2.msra.mxu0 0.0
        %1366 = vmatprep.subr.mxu0 0.0
        %1367 = vmatpush2.msra.mxu0 0.0
        %1368 = vmatprep.subr.mxu0 0.0
        %1369 = vmatpush2.msra.mxu0 0.0
        %1370 = vmatprep.subr.mxu0 0.0
        %1371 = vmatpush2.msra.mxu0 0.0
        %1372 = vmatprep.subr.mxu0 0.0
        %1373 = vmatpush2.msra.mxu0 0.0
        %1374 = vmatprep.subr.mxu0 0.0
        %1375 = vmatpush2.msra.mxu0 0.0
        %1376 = vmatprep.subr.mxu0 0.0
        %1377 = vmatpush2.msra.mxu0 0.0
        %1378 = vmatprep.subr.mxu0 0.0
        %1379 = vmatpush2.msra.mxu0 0.0
        %1380 = vmatprep.subr.mxu0 0.0
        %1381 = vmatpush2.msra.mxu0 0.0
        %1382 = vmatprep.subr.mxu0 0.0
        %1383 = vmatpush2.msra.mxu0 0.0
        %1384 = vmatprep.subr.mxu0 0.0
        %1385 = vmatpush2.msra.mxu0 0.0
        %1386 = vmatprep.subr.mxu0 0.0
        %1387 = vmatpush2.msra.mxu0 0.0
        %1388 = vmatprep.subr.mxu0 0.0
        %1389 = vmatpush2.msra.mxu0 0.0
        %1390 = vmatprep.subr.mxu0 0.0
        %1391 = vmatpush2.msra.mxu0 0.0
        %1392 = vmatprep.subr.mxu0 0.0
        %1393 = vmatpush2.msra.mxu0 0.0
        %1394 = vmatprep.mubr.f32.mxu0 0.0
        %1395 = vmatmul.mubr.f32.gmra.mxu0 %v1322
        %v1396 = vpop.f32.mrf.mxu0
        %v1397 = vadd.f32 0.0, %v1396
        %v1398 = vpop.f32.mrf.mxu0
        %v1399 = vadd.f32 0.0, %v1398
        %1400 = vdwg.mxu0
        %1401 = vmatprep.subr.mxu0 0.0
        %1402 = vmatpush1.msra.mxu0 0.0
        %1403 = vmatprep.subr.mxu0 0.0
        %1404 = vmatpush1.msra.mxu0 0.0
        %1405 = vmatprep.subr.mxu0 0.0
        %1406 = vmatpush1.msra.mxu0 0.0
        %1407 = vmatprep.subr.mxu0 0.0
        %1408 = vmatpush1.msra.mxu0 0.0
        %1409 = vmatprep.subr.mxu0 0.0
        %1410 = vmatpush1.msra.mxu0 0.0
        %1411 = vmatprep.subr.mxu0 0.0
        %1412 = vmatpush1.msra.mxu0 0.0
        %1413 = vmatprep.subr.mxu0 0.0
        %1414 = vmatpush1.msra.mxu0 0.0
        %1415 = vmatprep.subr.mxu0 0.0
        %1416 = vmatpush1.msra.mxu0 0.0
        %1417 = vmatprep.subr.mxu0 0.0
        %1418 = vmatpush1.msra.mxu0 0.0
        %1419 = vmatprep.subr.mxu0 0.0
        %1420 = vmatpush1.msra.mxu0 0.0
        %1421 = vmatprep.subr.mxu0 0.0
        %1422 = vmatpush1.msra.mxu0 0.0
        %1423 = vmatprep.subr.mxu0 0.0
        %1424 = vmatpush1.msra.mxu0 0.0
        %1425 = vmatprep.subr.mxu0 0.0
        %1426 = vmatpush1.msra.mxu0 0.0
        %1427 = vmatprep.subr.mxu0 0.0
        %1428 = vmatpush1.msra.mxu0 0.0
        %1429 = vmatprep.subr.mxu0 0.0
        %1430 = vmatpush1.msra.mxu0 0.0
        %1431 = vmatprep.subr.mxu0 0.0
        %1432 = vmatpush1.msra.mxu0 %v1328
        %1433 = vmatprep.subr.mxu0 0.0
        %1434 = vmatpush2.msra.mxu0 0.0
        %1435 = vmatprep.subr.mxu0 0.0
        %1436 = vmatpush2.msra.mxu0 0.0
        %1437 = vmatprep.subr.mxu0 0.0
        %1438 = vmatpush2.msra.mxu0 0.0
        %1439 = vmatprep.subr.mxu0 0.0
        %1440 = vmatpush2.msra.mxu0 0.0
        %1441 = vmatprep.subr.mxu0 0.0
        %1442 = vmatpush2.msra.mxu0 0.0
        %1443 = vmatprep.subr.mxu0 0.0
        %1444 = vmatpush2.msra.mxu0 0.0
        %1445 = vmatprep.subr.mxu0 0.0
        %1446 = vmatpush2.msra.mxu0 0.0
        %1447 = vmatprep.subr.mxu0 0.0
        %1448 = vmatpush2.msra.mxu0 0.0
        %1449 = vmatprep.subr.mxu0 0.0
        %1450 = vmatpush2.msra.mxu0 0.0
        %1451 = vmatprep.subr.mxu0 0.0
        %1452 = vmatpush2.msra.mxu0 0.0
        %1453 = vmatprep.subr.mxu0 0.0
        %1454 = vmatpush2.msra.mxu0 0.0
        %1455 = vmatprep.subr.mxu0 0.0
        %1456 = vmatpush2.msra.mxu0 0.0
        %1457 = vmatprep.subr.mxu0 0.0
        %1458 = vmatpush2.msra.mxu0 0.0
        %1459 = vmatprep.subr.mxu0 0.0
        %1460 = vmatpush2.msra.mxu0 0.0
        %1461 = vmatprep.subr.mxu0 0.0
        %1462 = vmatpush2.msra.mxu0 0.0
        %1463 = vmatprep.subr.mxu0 0.0
        %1464 = vmatpush2.msra.mxu0 0.0
        %1465 = vmatprep.mubr.f32.mxu0 0.0
        %1466 = vmatmul.mubr.f32.gmra.mxu0 %v1322
        %v1467 = vpop.f32.mrf.mxu0
        %v1468 = vadd.f32 0.0, %v1467
        %v1469 = vpop.f32.mrf.mxu0
        %1470 = vdwg.mxu0
        %v1471 = vadd.f32 %v1300, %v1397
        %v1472 = vadd.f32 %v1301, %v1399
        %v1473 = vadd.f32 %v1302, %v1468
        %v1474 = vld [vmem:[%s182] sm:$0xff]
        %v1475 = vld [vmem:[%s182 + $0x8] sm:$0xff]
        %v1478 = vcombine.high %v1474, %v1474
        %v1479 = vcombine.high %v1475, %v1475
        %1480 = vrot.lane.b32.xlu0 %v1474, 91
        %v1481 = vpop.permute.xlu0 %1480
        %1482 = vrot.lane.b32.xlu0 %v1478, 91
        %v1483 = vpop.permute.xlu0 %1482
        %1484 = vrot.lane.b32.xlu0 %v1475, 91
        %v1485 = vpop.permute.xlu0 %1484
        %1486 = vrot.lane.b32.xlu0 %v1479, 91
        %v1487 = vpop.permute.xlu0 %1486
        %vm1488 = vcmask 744448
        %v1489 = vsel %vm1488, %v1481, %v1483
        %v1490 = vsel %vm1488, %v1483, %v1485
        %v1491 = vsel %vm1488, %v1485, %v1487
        %v1493 = vsel %vm316, %v295, 0
        %v1495 = vsel %vm320, %v1489, 0
        %v1497 = vsel %vm320, %v1490, 0
        %v1499 = vsel %vm320, %v1491, 0
        %1501 = vmatprep.subr.mxu0 0.0
        %1502 = vmatpush1.msra.mxu0 0.0
        %1503 = vmatprep.subr.mxu0 0.0
        %1504 = vmatpush1.msra.mxu0 0.0
        %1505 = vmatprep.subr.mxu0 0.0
        %1506 = vmatpush1.msra.mxu0 0.0
        %1507 = vmatprep.subr.mxu0 0.0
        %1508 = vmatpush1.msra.mxu0 0.0
        %1509 = vmatprep.subr.mxu0 0.0
        %1510 = vmatpush1.msra.mxu0 0.0
        %1511 = vmatprep.subr.mxu0 0.0
        %1512 = vmatpush1.msra.mxu0 0.0
        %1513 = vmatprep.subr.mxu0 0.0
        %1514 = vmatpush1.msra.mxu0 0.0
        %1515 = vmatprep.subr.mxu0 0.0
        %1516 = vmatpush1.msra.mxu0 0.0
        %1517 = vmatprep.subr.mxu0 0.0
        %1518 = vmatpush1.msra.mxu0 0.0
        %1519 = vmatprep.subr.mxu0 0.0
        %1520 = vmatpush1.msra.mxu0 0.0
        %1521 = vmatprep.subr.mxu0 0.0
        %1522 = vmatpush1.msra.mxu0 0.0
        %1523 = vmatprep.subr.mxu0 0.0
        %1524 = vmatpush1.msra.mxu0 0.0
        %1525 = vmatprep.subr.mxu0 0.0
        %1526 = vmatpush1.msra.mxu0 0.0
        %1527 = vmatprep.subr.mxu0 0.0
        %1528 = vmatpush1.msra.mxu0 0.0
        %1529 = vmatprep.subr.mxu0 0.0
        %1530 = vmatpush1.msra.mxu0 0.0
        %1531 = vmatprep.subr.mxu0 %v1497
        %1532 = vmatpush1.msra.mxu0 %v1495
        %1533 = vmatprep.subr.mxu0 0.0
        %1534 = vmatpush2.msra.mxu0 0.0
        %1535 = vmatprep.subr.mxu0 0.0
        %1536 = vmatpush2.msra.mxu0 0.0
        %1537 = vmatprep.subr.mxu0 0.0
        %1538 = vmatpush2.msra.mxu0 0.0
        %1539 = vmatprep.subr.mxu0 0.0
        %1540 = vmatpush2.msra.mxu0 0.0
        %1541 = vmatprep.subr.mxu0 0.0
        %1542 = vmatpush2.msra.mxu0 0.0
        %1543 = vmatprep.subr.mxu0 0.0
        %1544 = vmatpush2.msra.mxu0 0.0
        %1545 = vmatprep.subr.mxu0 0.0
        %1546 = vmatpush2.msra.mxu0 0.0
        %1547 = vmatprep.subr.mxu0 0.0
        %1548 = vmatpush2.msra.mxu0 0.0
        %1549 = vmatprep.subr.mxu0 0.0
        %1550 = vmatpush2.msra.mxu0 0.0
        %1551 = vmatprep.subr.mxu0 0.0
        %1552 = vmatpush2.msra.mxu0 0.0
        %1553 = vmatprep.subr.mxu0 0.0
        %1554 = vmatpush2.msra.mxu0 0.0
        %1555 = vmatprep.subr.mxu0 0.0
        %1556 = vmatpush2.msra.mxu0 0.0
        %1557 = vmatprep.subr.mxu0 0.0
        %1558 = vmatpush2.msra.mxu0 0.0
        %1559 = vmatprep.subr.mxu0 0.0
        %1560 = vmatpush2.msra.mxu0 0.0
        %1561 = vmatprep.subr.mxu0 0.0
        %1562 = vmatpush2.msra.mxu0 0.0
        %1563 = vmatprep.subr.mxu0 0.0
        %1564 = vmatpush2.msra.mxu0 0.0
        %1565 = vmatprep.mubr.f32.mxu0 0.0
        %1566 = vmatmul.mubr.f32.gmra.mxu0 %v1493
        %v1567 = vpop.f32.mrf.mxu0
        %v1568 = vadd.f32 0.0, %v1567
        %v1569 = vpop.f32.mrf.mxu0
        %v1570 = vadd.f32 0.0, %v1569
        %1571 = vdwg.mxu0
        %1572 = vmatprep.subr.mxu0 0.0
        %1573 = vmatpush1.msra.mxu0 0.0
        %1574 = vmatprep.subr.mxu0 0.0
        %1575 = vmatpush1.msra.mxu0 0.0
        %1576 = vmatprep.subr.mxu0 0.0
        %1577 = vmatpush1.msra.mxu0 0.0
        %1578 = vmatprep.subr.mxu0 0.0
        %1579 = vmatpush1.msra.mxu0 0.0
        %1580 = vmatprep.subr.mxu0 0.0
        %1581 = vmatpush1.msra.mxu0 0.0
        %1582 = vmatprep.subr.mxu0 0.0
        %1583 = vmatpush1.msra.mxu0 0.0
        %1584 = vmatprep.subr.mxu0 0.0
        %1585 = vmatpush1.msra.mxu0 0.0
        %1586 = vmatprep.subr.mxu0 0.0
        %1587 = vmatpush1.msra.mxu0 0.0
        %1588 = vmatprep.subr.mxu0 0.0
        %1589 = vmatpush1.msra.mxu0 0.0
        %1590 = vmatprep.subr.mxu0 0.0
        %1591 = vmatpush1.msra.mxu0 0.0
        %1592 = vmatprep.subr.mxu0 0.0
        %1593 = vmatpush1.msra.mxu0 0.0
        %1594 = vmatprep.subr.mxu0 0.0
        %1595 = vmatpush1.msra.mxu0 0.0
        %1596 = vmatprep.subr.mxu0 0.0
        %1597 = vmatpush1.msra.mxu0 0.0
        %1598 = vmatprep.subr.mxu0 0.0
        %1599 = vmatpush1.msra.mxu0 0.0
        %1600 = vmatprep.subr.mxu0 0.0
        %1601 = vmatpush1.msra.mxu0 0.0
        %1602 = vmatprep.subr.mxu0 0.0
        %1603 = vmatpush1.msra.mxu0 %v1499
        %1604 = vmatprep.subr.mxu0 0.0
        %1605 = vmatpush2.msra.mxu0 0.0
        %1606 = vmatprep.subr.mxu0 0.0
        %1607 = vmatpush2.msra.mxu0 0.0
        %1608 = vmatprep.subr.mxu0 0.0
        %1609 = vmatpush2.msra.mxu0 0.0
        %1610 = vmatprep.subr.mxu0 0.0
        %1611 = vmatpush2.msra.mxu0 0.0
        %1612 = vmatprep.subr.mxu0 0.0
        %1613 = vmatpush2.msra.mxu0 0.0
        %1614 = vmatprep.subr.mxu0 0.0
        %1615 = vmatpush2.msra.mxu0 0.0
        %1616 = vmatprep.subr.mxu0 0.0
        %1617 = vmatpush2.msra.mxu0 0.0
        %1618 = vmatprep.subr.mxu0 0.0
        %1619 = vmatpush2.msra.mxu0 0.0
        %1620 = vmatprep.subr.mxu0 0.0
        %1621 = vmatpush2.msra.mxu0 0.0
        %1622 = vmatprep.subr.mxu0 0.0
        %1623 = vmatpush2.msra.mxu0 0.0
        %1624 = vmatprep.subr.mxu0 0.0
        %1625 = vmatpush2.msra.mxu0 0.0
        %1626 = vmatprep.subr.mxu0 0.0
        %1627 = vmatpush2.msra.mxu0 0.0
        %1628 = vmatprep.subr.mxu0 0.0
        %1629 = vmatpush2.msra.mxu0 0.0
        %1630 = vmatprep.subr.mxu0 0.0
        %1631 = vmatpush2.msra.mxu0 0.0
        %1632 = vmatprep.subr.mxu0 0.0
        %1633 = vmatpush2.msra.mxu0 0.0
        %1634 = vmatprep.subr.mxu0 0.0
        %1635 = vmatpush2.msra.mxu0 0.0
        %1636 = vmatprep.mubr.f32.mxu0 0.0
        %1637 = vmatmul.mubr.f32.gmra.mxu0 %v1493
        %v1638 = vpop.f32.mrf.mxu0
        %v1639 = vadd.f32 0.0, %v1638
        %v1640 = vpop.f32.mrf.mxu0
        %1641 = vdwg.mxu0
        %v1642 = vadd.f32 %v1471, %v1568
        %v1643 = vadd.f32 %v1472, %v1570
        %v1644 = vadd.f32 %v1473, %v1639
        %v1645 = vld [vmem:[%s182] sm:$0xff]
        %v1646 = vld [vmem:[%s182 + $0x8] sm:$0xff]
        %v1649 = vcombine.high %v1645, %v1645
        %v1650 = vcombine.high %v1646, %v1646
        %1651 = vrot.lane.b32.xlu0 %v1645, 90
        %v1652 = vpop.permute.xlu0 %1651
        %1653 = vrot.lane.b32.xlu0 %v1649, 90
        %v1654 = vpop.permute.xlu0 %1653
        %1655 = vrot.lane.b32.xlu0 %v1646, 90
        %v1656 = vpop.permute.xlu0 %1655
        %1657 = vrot.lane.b32.xlu0 %v1650, 90
        %v1658 = vpop.permute.xlu0 %1657
        %vm1659 = vcmask 736256
        %v1660 = vsel %vm1659, %v1652, %v1654
        %v1661 = vsel %vm1659, %v1654, %v1656
        %v1662 = vsel %vm1659, %v1656, %v1658
        %v1664 = vsel %vm316, %v296, 0
        %v1666 = vsel %vm320, %v1660, 0
        %v1668 = vsel %vm320, %v1661, 0
        %v1670 = vsel %vm320, %v1662, 0
        %1672 = vmatprep.subr.mxu0 0.0
        %1673 = vmatpush1.msra.mxu0 0.0
        %1674 = vmatprep.subr.mxu0 0.0
        %1675 = vmatpush1.msra.mxu0 0.0
        %1676 = vmatprep.subr.mxu0 0.0
        %1677 = vmatpush1.msra.mxu0 0.0
        %1678 = vmatprep.subr.mxu0 0.0
        %1679 = vmatpush1.msra.mxu0 0.0
        %1680 = vmatprep.subr.mxu0 0.0
        %1681 = vmatpush1.msra.mxu0 0.0
        %1682 = vmatprep.subr.mxu0 0.0
        %1683 = vmatpush1.msra.mxu0 0.0
        %1684 = vmatprep.subr.mxu0 0.0
        %1685 = vmatpush1.msra.mxu0 0.0
        %1686 = vmatprep.subr.mxu0 0.0
        %1687 = vmatpush1.msra.mxu0 0.0
        %1688 = vmatprep.subr.mxu0 0.0
        %1689 = vmatpush1.msra.mxu0 0.0
        %1690 = vmatprep.subr.mxu0 0.0
        %1691 = vmatpush1.msra.mxu0 0.0
        %1692 = vmatprep.subr.mxu0 0.0
        %1693 = vmatpush1.msra.mxu0 0.0
        %1694 = vmatprep.subr.mxu0 0.0
        %1695 = vmatpush1.msra.mxu0 0.0
        %1696 = vmatprep.subr.mxu0 0.0
        %1697 = vmatpush1.msra.mxu0 0.0
        %1698 = vmatprep.subr.mxu0 0.0
        %1699 = vmatpush1.msra.mxu0 0.0
        %1700 = vmatprep.subr.mxu0 0.0
        %1701 = vmatpush1.msra.mxu0 0.0
        %1702 = vmatprep.subr.mxu0 %v1668
        %1703 = vmatpush1.msra.mxu0 %v1666
        %1704 = vmatprep.subr.mxu0 0.0
        %1705 = vmatpush2.msra.mxu0 0.0
        %1706 = vmatprep.subr.mxu0 0.0
        %1707 = vmatpush2.msra.mxu0 0.0
        %1708 = vmatprep.subr.mxu0 0.0
        %1709 = vmatpush2.msra.mxu0 0.0
        %1710 = vmatprep.subr.mxu0 0.0
        %1711 = vmatpush2.msra.mxu0 0.0
        %1712 = vmatprep.subr.mxu0 0.0
        %1713 = vmatpush2.msra.mxu0 0.0
        %1714 = vmatprep.subr.mxu0 0.0
        %1715 = vmatpush2.msra.mxu0 0.0
        %1716 = vmatprep.subr.mxu0 0.0
        %1717 = vmatpush2.msra.mxu0 0.0
        %1718 = vmatprep.subr.mxu0 0.0
        %1719 = vmatpush2.msra.mxu0 0.0
        %1720 = vmatprep.subr.mxu0 0.0
        %1721 = vmatpush2.msra.mxu0 0.0
        %1722 = vmatprep.subr.mxu0 0.0
        %1723 = vmatpush2.msra.mxu0 0.0
        %1724 = vmatprep.subr.mxu0 0.0
        %1725 = vmatpush2.msra.mxu0 0.0
        %1726 = vmatprep.subr.mxu0 0.0
        %1727 = vmatpush2.msra.mxu0 0.0
        %1728 = vmatprep.subr.mxu0 0.0
        %1729 = vmatpush2.msra.mxu0 0.0
        %1730 = vmatprep.subr.mxu0 0.0
        %1731 = vmatpush2.msra.mxu0 0.0
        %1732 = vmatprep.subr.mxu0 0.0
        %1733 = vmatpush2.msra.mxu0 0.0
        %1734 = vmatprep.subr.mxu0 0.0
        %1735 = vmatpush2.msra.mxu0 0.0
        %1736 = vmatprep.mubr.f32.mxu0 0.0
        %1737 = vmatmul.mubr.f32.gmra.mxu0 %v1664
        %v1738 = vpop.f32.mrf.mxu0
        %v1739 = vadd.f32 0.0, %v1738
        %v1740 = vpop.f32.mrf.mxu0
        %v1741 = vadd.f32 0.0, %v1740
        %1742 = vdwg.mxu0
        %1743 = vmatprep.subr.mxu0 0.0
        %1744 = vmatpush1.msra.mxu0 0.0
        %1745 = vmatprep.subr.mxu0 0.0
        %1746 = vmatpush1.msra.mxu0 0.0
        %1747 = vmatprep.subr.mxu0 0.0
        %1748 = vmatpush1.msra.mxu0 0.0
        %1749 = vmatprep.subr.mxu0 0.0
        %1750 = vmatpush1.msra.mxu0 0.0
        %1751 = vmatprep.subr.mxu0 0.0
        %1752 = vmatpush1.msra.mxu0 0.0
        %1753 = vmatprep.subr.mxu0 0.0
        %1754 = vmatpush1.msra.mxu0 0.0
        %1755 = vmatprep.subr.mxu0 0.0
        %1756 = vmatpush1.msra.mxu0 0.0
        %1757 = vmatprep.subr.mxu0 0.0
        %1758 = vmatpush1.msra.mxu0 0.0
        %1759 = vmatprep.subr.mxu0 0.0
        %1760 = vmatpush1.msra.mxu0 0.0
        %1761 = vmatprep.subr.mxu0 0.0
        %1762 = vmatpush1.msra.mxu0 0.0
        %1763 = vmatprep.subr.mxu0 0.0
        %1764 = vmatpush1.msra.mxu0 0.0
        %1765 = vmatprep.subr.mxu0 0.0
        %1766 = vmatpush1.msra.mxu0 0.0
        %1767 = vmatprep.subr.mxu0 0.0
        %1768 = vmatpush1.msra.mxu0 0.0
        %1769 = vmatprep.subr.mxu0 0.0
        %1770 = vmatpush1.msra.mxu0 0.0
        %1771 = vmatprep.subr.mxu0 0.0
        %1772 = vmatpush1.msra.mxu0 0.0
        %1773 = vmatprep.subr.mxu0 0.0
        %1774 = vmatpush1.msra.mxu0 %v1670
        %1775 = vmatprep.subr.mxu0 0.0
        %1776 = vmatpush2.msra.mxu0 0.0
        %1777 = vmatprep.subr.mxu0 0.0
        %1778 = vmatpush2.msra.mxu0 0.0
        %1779 = vmatprep.subr.mxu0 0.0
        %1780 = vmatpush2.msra.mxu0 0.0
        %1781 = vmatprep.subr.mxu0 0.0
        %1782 = vmatpush2.msra.mxu0 0.0
        %1783 = vmatprep.subr.mxu0 0.0
        %1784 = vmatpush2.msra.mxu0 0.0
        %1785 = vmatprep.subr.mxu0 0.0
        %1786 = vmatpush2.msra.mxu0 0.0
        %1787 = vmatprep.subr.mxu0 0.0
        %1788 = vmatpush2.msra.mxu0 0.0
        %1789 = vmatprep.subr.mxu0 0.0
        %1790 = vmatpush2.msra.mxu0 0.0
        %1791 = vmatprep.subr.mxu0 0.0
        %1792 = vmatpush2.msra.mxu0 0.0
        %1793 = vmatprep.subr.mxu0 0.0
        %1794 = vmatpush2.msra.mxu0 0.0
        %1795 = vmatprep.subr.mxu0 0.0
        %1796 = vmatpush2.msra.mxu0 0.0
        %1797 = vmatprep.subr.mxu0 0.0
        %1798 = vmatpush2.msra.mxu0 0.0
        %1799 = vmatprep.subr.mxu0 0.0
        %1800 = vmatpush2.msra.mxu0 0.0
        %1801 = vmatprep.subr.mxu0 0.0
        %1802 = vmatpush2.msra.mxu0 0.0
        %1803 = vmatprep.subr.mxu0 0.0
        %1804 = vmatpush2.msra.mxu0 0.0
        %1805 = vmatprep.subr.mxu0 0.0
        %1806 = vmatpush2.msra.mxu0 0.0
        %1807 = vmatprep.mubr.f32.mxu0 0.0
        %1808 = vmatmul.mubr.f32.gmra.mxu0 %v1664
        %v1809 = vpop.f32.mrf.mxu0
        %v1810 = vadd.f32 0.0, %v1809
        %v1811 = vpop.f32.mrf.mxu0
        %1812 = vdwg.mxu0
        %v1813 = vadd.f32 %v1642, %v1739
        %v1814 = vadd.f32 %v1643, %v1741
        %v1815 = vadd.f32 %v1644, %v1810
        %1816 = vst [vmem:[%s177] sm:$0xff] %v1813
        %1817 = vst [vmem:[%s177 + $0x8] sm:$0xff] %v1814
        %1818 = vst [vmem:[%s177 + $0x10] sm:$0xff] %v1815
        %s1819 = sand.u32 %s94, 1
        %s1820 = scalar_lea.sflag [#allocation3], %s1819
        %s1821 = sand.u32 %s94, 1
        %s1822 = smul.addr %s1821, 24
        %s1823 = scalar_lea.vmem [#allocation5], %s1822
        // Predicated region
        $region37: #{tpu_custom_call.1} parent=31 // pred_check
          %p1824 = pneg %p104
        $region38: #{tpu_custom_call.1} parent=31 // pred_check_branch
          %1826 = sbr.rel (%p1824) target = $region40
        $region39: #{tpu_custom_call.1} parent=31 // pred_region
          %s1828 = ssub.s32 384, 384
          %1829 = vsyncadd %s1820, %s1828
          %s1830 = smul.addr %s18, 3
          %s1831 = smul.addr %s1830, 128
          %s1832 = scalar_lea.hbm %s3, %s1831
          %s1834 = sshll.u32 %s1823, 4
          %s1835 = int_to_ptr.vmem [resolvable:$true] %s1834
          %1837 = dma.vmem_to_hbm [thread:$0]  %s1835, 384, %s1832, %s1820
        $region40: #{tpu_custom_call.1} parent=31 // pred_fallthru
          _
      $region32: #{tpu_custom_call.1} parent=5 // pred_fallthru
        _
      %p1838 = scmp.le.s32.totalorder 2, %s13
      // Predicated region
      $region41: #{tpu_custom_call.1} parent=5 // pred_check
        %p1839 = pneg %p1838
      $region42: #{tpu_custom_call.1} parent=5 // pred_check_branch
        %1841 = sbr.rel (%p1839) target = $region44
      $region43: #{tpu_custom_call.1} parent=5 // pred_region
        %s1842 = ssub.s32 %s13, 2
        // Predicated region
        $region45: #{tpu_custom_call.1} parent=43 // pred_check
          %p1843 = pneg %p110
        $region46: #{tpu_custom_call.1} parent=43 // pred_check_branch
          %1845 = sbr.rel (%p1843) target = $region48
        $region47: #{tpu_custom_call.1} parent=43 // pred_region
          %s1846 = sand.u32 %s95, 1
          %s1847 = scalar_lea.sflag [#allocation3], %s1846
          %s1848 = sand.u32 %s95, 1
          %s1849 = smul.addr %s1848, 24
          %s1850 = scalar_lea.vmem [#allocation5], %s1849
          %1851 = dma.done %s1847, 384
        $region48: #{tpu_custom_call.1} parent=43 // pred_fallthru
          _
      $region44: #{tpu_custom_call.1} parent=5 // pred_fallthru
        _
    $region6: #{tpu_custom_call.1} parent=1 // loop_footer
      %s17 = sadd.s32 1, %s13
    $region7: #{tpu_custom_call.1} parent=1 // loop_footer_branch
      %12 = sbr.rel target = $region3
    $region8: #{tpu_custom_call.1} parent=1 // loop_exit
      _
    %1852 = vsyncpa [#allocation3], 1
    %s1853 = scalar_lea.sflag [#allocation3], 1
    %1854 = vsyncpa %s1853, 1
    %1855 = vsyncpa [#allocation4], 1
    %s1856 = scalar_lea.sflag [#allocation4], 1
    %1857 = vsyncpa %s1856, 1

</llo_original>
